<compile_context>
chip_gen: v5e
topology: v5e:2x2
jax: 0.10.0
libtpu: 0.0.40
codegen_flags: <defaults>
</compile_context>

<pallas_src>
import jax
import jax.numpy as jnp
from jax import lax
from jax.experimental import pallas as pl
from jax.experimental.pallas import tpu as pltpu

# ---- small synthetic config (consistent with the module's forward) ----
BATCH = 2        # B
N_TOKENS = 8     # N (variate tokens)
D_MODEL = 32     # d_model
N_HEADS = 4      # heads in FullAttention / AttentionLayer
D_FF = 64        # hidden dim of the conv1d FFN
N_LAYERS = 2     # number of EncoderLayers
EPS = 1e-5       # nn.LayerNorm default eps
MM_DTYPE = jnp.bfloat16   # MXU operand dtype (accumulation stays f32)


def _layer_norm(x, gamma, beta):
    mean = jnp.mean(x, axis=-1, keepdims=True)
    var = jnp.mean((x - mean) ** 2, axis=-1, keepdims=True)
    return (x - mean) * lax.rsqrt(var + EPS) * gamma + beta


# ---------------- Pallas kernel (one grid step = one (batch, layer)) ----------------

def _make_kernel(N, D, H, mm_dtype):
    dh = D // H
    scale = 1.0 / (dh ** 0.5)
    dn_qk = (((2,), (2,)), ((0,), (0,)))   # (H,N,dh) x (H,N,dh) -> (H,N,N)
    dn_pv = (((2,), (1,)), ((0,), (0,)))   # (H,N,N)  x (H,N,dh) -> (H,N,dh)

    def kernel(x_ref, wqkv_ref, bqkv_ref, wo_ref, w1_ref, b1_ref, w2_ref,
               vecd_ref, fin_ref, o_ref, x_sc):
        # TODO(synk): attn_mask is not wired in (iTransformer uses
        # FullAttention(mask_flag=False), so the mask is always None here).
        l = pl.program_id(1)

        @pl.when(l == 0)
        def _():
            x_sc[...] = x_ref[...].astype(jnp.float32)

        x = x_sc[...]                                   # (N, D) f32 residual state

        bo  = vecd_ref[0, 0:1, :]                       # (1, D) f32
        b2  = vecd_ref[0, 1:2, :]
        g1  = vecd_ref[0, 2:3, :]
        be1 = vecd_ref[0, 3:4, :]
        g2  = vecd_ref[0, 4:5, :]
        be2 = vecd_ref[0, 5:6, :]

        # ---- fused QKV projection: one lane-dense (N, D) @ (D, 3D) matmul ----
        qkv = jnp.dot(x.astype(mm_dtype), wqkv_ref[0],
                      preferred_element_type=jnp.float32) + bqkv_ref[0]   # (N, 3D) f32
        qkv_mm = qkv.astype(mm_dtype)

        # head-major operands via static lane slices + leading-axis stack
        qh = jnp.stack([qkv_mm[:, h * dh:(h + 1) * dh] for h in range(H)], axis=0)
        kh = jnp.stack([qkv_mm[:, D + h * dh:D + (h + 1) * dh] for h in range(H)], axis=0)
        vh = jnp.stack([qkv_mm[:, 2 * D + h * dh:2 * D + (h + 1) * dh] for h in range(H)], axis=0)

        # ---- scores / softmax / context (heads batched on MXU, softmax in f32) ----
        s = lax.dot_general(qh, kh, dn_qk,
                            preferred_element_type=jnp.float32) * scale   # (H, N, N)
        s = s - jnp.max(s, axis=-1, keepdims=True)
        p = jnp.exp(s)
        p = p / jnp.sum(p, axis=-1, keepdims=True)        # exact division
        ctx = lax.dot_general(p.astype(mm_dtype), vh, dn_pv,
                              preferred_element_type=jnp.float32)         # (H, N, dh)

        # heads back on the lane axis -> single folded output projection (contraction D)
        ctx_flat = jnp.concatenate([ctx[h] for h in range(H)], axis=-1)   # (N, D)
        attn = jnp.dot(ctx_flat.astype(mm_dtype), wo_ref[0],
                       preferred_element_type=jnp.float32) + bo           # (N, D)

        # ---- residual + norm1 ----
        xn = _layer_norm(x + attn, g1, be1)

        # ---- Conv1d(k=1) -> ReLU -> Conv1d(k=1) FFN ----
        y = jnp.dot(xn.astype(mm_dtype), w1_ref[0],
                    preferred_element_type=jnp.float32) + b1_ref[0]
        y = jnp.maximum(y, 0.0)
        y = jnp.dot(y.astype(mm_dtype), w2_ref[0],
                    preferred_element_type=jnp.float32) + b2

        # ---- residual + norm2 ----
        x_new = _layer_norm(xn + y, g2, be2)
        x_sc[...] = x_new

        # ---- final encoder LayerNorm + store (natural (N, D) layout) ----
        @pl.when(l == pl.num_programs(1) - 1)
        def _():
            o_ref[...] = _layer_norm(x_new, fin_ref[0:1], fin_ref[1:2]).astype(o_ref.dtype)

    return kernel


# ---------------- wrapper-side parameter packing (pure JAX, one-time) ----------------

def pack_params(layer_params, final_gamma, final_beta, mm_dtype):
    wqkv, bqkv, wo, w1, b1, w2, vecd = [], [], [], [], [], [], []
    for p in layer_params:
        wqkv.append(jnp.concatenate([p["wq"], p["wk"], p["wv"]], axis=1))   # (D, 3D)
        bqkv.append(jnp.concatenate([p["bq"], p["bk"], p["bv"]], axis=1))   # (1, 3D)
        wo.append(p["wo"])                                                  # (D, D)
        w1.append(p["w1"])                                                  # (D, DFF)
        b1.append(p["b1"])                                                  # (1, DFF)
        w2.append(p["w2"])                                                  # (DFF, D)
        vecd.append(jnp.stack([p["bo"][0], p["b2"][0], p["g1"][0],
                               p["be1"][0], p["g2"][0], p["be2"][0]], axis=0))  # (6, D)
    return (jnp.stack(wqkv, 0).astype(mm_dtype),             # (L, D, 3D)   bf16
            jnp.stack(bqkv, 0),                              # (L, 1, 3D)   f32
            jnp.stack(wo, 0).astype(mm_dtype),               # (L, D, D)    bf16
            jnp.stack(w1, 0).astype(mm_dtype),               # (L, D, DFF)  bf16
            jnp.stack(b1, 0),                                # (L, 1, DFF)  f32
            jnp.stack(w2, 0).astype(mm_dtype),               # (L, DFF, D)  bf16
            jnp.stack(vecd, 0),                              # (L, 6, D)    f32
            jnp.concatenate([final_gamma, final_beta], 0))   # (2, D)       f32


def encoder_forward(x, layer_params, final_gamma, final_beta):
    B, N, D = x.shape
    DFF = D_FF
    (wqkv, bqkv, wo, w1, b1, w2, vecd, fin) = pack_params(
        layer_params, final_gamma, final_beta, MM_DTYPE)
    L = wqkv.shape[0]

    kernel = _make_kernel(N, D, N_HEADS, MM_DTYPE)

    y = pl.pallas_call(
        kernel,
        out_shape=jax.ShapeDtypeStruct((B * N, D), x.dtype),
        grid_spec=pltpu.PrefetchScalarGridSpec(
            num_scalar_prefetch=0,
            grid=(B, L),                                   # (parallel, layer-stream)
            in_specs=[
                pl.BlockSpec((N, D), lambda b, l: (b, 0)),            # x (per batch)
                pl.BlockSpec((1, D, 3 * D), lambda b, l: (l, 0, 0)),  # wqkv (per layer)
                pl.BlockSpec((1, 1, 3 * D), lambda b, l: (l, 0, 0)),  # bqkv
                pl.BlockSpec((1, D, D), lambda b, l: (l, 0, 0)),      # wo
                pl.BlockSpec((1, D, DFF), lambda b, l: (l, 0, 0)),    # w1
                pl.BlockSpec((1, 1, DFF), lambda b, l: (l, 0, 0)),    # b1
                pl.BlockSpec((1, DFF, D), lambda b, l: (l, 0, 0)),    # w2
                pl.BlockSpec((1, 6, D), lambda b, l: (l, 0, 0)),      # bo,b2,g1,be1,g2,be2
                pl.BlockSpec((2, D), lambda b, l: (0, 0)),            # final gamma/beta
            ],
            out_specs=pl.BlockSpec((N, D), lambda b, l: (b, 0)),
            scratch_shapes=[pltpu.VMEM((N, D), jnp.float32)]),        # resident activation
        compiler_params=pltpu.CompilerParams(
            dimension_semantics=("parallel", "arbitrary")),
    )(x.reshape(B * N, D), wqkv, bqkv, wo, w1, b1, w2, vecd, fin)
    return y.reshape(B, N, D)


# ---------------- deterministic parameter init ----------------

def init_layer_params(key):
    ks = jax.random.split(key, 8)
    s = 0.05
    return {
        "wq": jax.random.normal(ks[0], (D_MODEL, D_MODEL), jnp.float32) * s,
        "bq": jax.random.normal(ks[1], (1, D_MODEL), jnp.float32) * s,
        "wk": jax.random.normal(ks[2], (D_MODEL, D_MODEL), jnp.float32) * s,
        "bk": jax.random.normal(ks[3], (1, D_MODEL), jnp.float32) * s,
        "wv": jax.random.normal(ks[4], (D_MODEL, D_MODEL), jnp.float32) * s,
        "bv": jax.random.normal(ks[5], (1, D_MODEL), jnp.float32) * s,
        "wo": jax.random.normal(ks[6], (D_MODEL, D_MODEL), jnp.float32) * s,
        "bo": jnp.zeros((1, D_MODEL), jnp.float32),
        "w1": jax.random.normal(ks[7], (D_MODEL, D_FF), jnp.float32) * s,
        "b1": jnp.zeros((1, D_FF), jnp.float32),
        "w2": jax.random.normal(jax.random.fold_in(key, 99),
                                (D_FF, D_MODEL), jnp.float32) * s,
        "b2": jnp.zeros((1, D_MODEL), jnp.float32),
        "g1": jnp.ones((1, D_MODEL), jnp.float32),
        "be1": jnp.zeros((1, D_MODEL), jnp.float32),
        "g2": jnp.ones((1, D_MODEL), jnp.float32),
        "be2": jnp.zeros((1, D_MODEL), jnp.float32),
    }


# ---------------- pure-f32 reference (PyTorch-equivalent semantics) ----------------

def ref_layer(x, p):
    B, N, D = x.shape
    H, dh = N_HEADS, D // N_HEADS
    q = x @ p["wq"] + p["bq"]
    k = x @ p["wk"] + p["bk"]
    v = x @ p["wv"] + p["bv"]
    qh = q.reshape(B, N, H, dh).transpose(0, 2, 1, 3)
    kh = k.reshape(B, N, H, dh).transpose(0, 2, 1, 3)
    vh = v.reshape(B, N, H, dh).transpose(0, 2, 1, 3)
    s = jnp.einsum("bhqd,bhkd->bhqk", qh, kh) * (1.0 / (dh ** 0.5))
    pr = jax.nn.softmax(s, axis=-1)
    o = jnp.einsum("bhqk,bhkd->bhqd", pr, vh).transpose(0, 2, 1, 3).reshape(B, N, D)
    o = o @ p["wo"] + p["bo"]
    xn = _layer_norm(x + o, p["g1"], p["be1"])
    y = jnp.maximum(xn @ p["w1"] + p["b1"], 0.0) @ p["w2"] + p["b2"]
    return _layer_norm(xn + y, p["g2"], p["be2"])


def ref_encoder(x, layer_params, fg, fb):
    for p in layer_params:
        x = ref_layer(x, p)
    return _layer_norm(x, fg, fb)


# ------- reference with the SAME bf16 MXU-operand rounding as the kernel -------
# (tight structural check: any packing / indexing bug shows up at O(1) error)

def ref_encoder_matched(x, layer_params, fg, fb, mm):
    B, N, D = x.shape
    H, dh = N_HEADS, D // N_HEADS
    scale = 1.0 / (dh ** 0.5)
    xf = x.reshape(B * N, D).astype(jnp.float32)
    for p in layer_params:
        wqkv = jnp.concatenate([p["wq"], p["wk"], p["wv"]], axis=1).astype(mm)
        bqkv = jnp.concatenate([p["bq"], p["bk"], p["bv"]], axis=1)
        qkv = jnp.dot(xf.astype(mm), wqkv, preferred_element_type=jnp.float32) + bqkv
        qkv_mm = qkv.astype(mm)
        q = qkv_mm[:, 0 * D:1 * D].reshape(B, N, H, dh).transpose(0, 2, 1, 3)
        k = qkv_mm[:, 1 * D:2 * D].reshape(B, N, H, dh).transpose(0, 2, 1, 3)
        v = qkv_mm[:, 2 * D:3 * D].reshape(B, N, H, dh).transpose(0, 2, 1, 3)
        s = jnp.einsum("bhqd,bhkd->bhqk", q, k,
                       preferred_element_type=jnp.float32) * scale
        s = s - jnp.max(s, axis=-1, keepdims=True)
        pr = jnp.exp(s)
        pr = pr / jnp.sum(pr, axis=-1, keepdims=True)
        ctx = jnp.einsum("bhqk,bhkd->bhqd", pr.astype(mm), v,
                         preferred_element_type=jnp.float32)
        ctx = ctx.transpose(0, 2, 1, 3).reshape(B * N, D)
        attn = jnp.dot(ctx.astype(mm), p["wo"].astype(mm),
                       preferred_element_type=jnp.float32) + p["bo"]
        xn = _layer_norm(xf + attn, p["g1"], p["be1"])
        y = jnp.dot(xn.astype(mm), p["w1"].astype(mm),
                    preferred_element_type=jnp.float32) + p["b1"]
        y = jnp.maximum(y, 0.0)
        y = jnp.dot(y.astype(mm), p["w2"].astype(mm),
                    preferred_element_type=jnp.float32) + p["b2"]
        xf = _layer_norm(xn + y, p["g2"], p["be2"])
    return _layer_norm(xf, fg, fb).reshape(B, N, D)


if __name__ == "__main__":
    root = jax.random.PRNGKey(0)
    kx, kp = jax.random.split(root)
    x = jax.random.normal(kx, (BATCH, N_TOKENS, D_MODEL), jnp.float32)

    layer_keys = jax.random.split(kp, N_LAYERS)
    layer_params = [init_layer_params(k) for k in layer_keys]
    final_gamma = jnp.ones((1, D_MODEL), jnp.float32)
    final_beta = jnp.zeros((1, D_MODEL), jnp.float32)

    out = encoder_forward(x, layer_params, final_gamma, final_beta)
    out = jax.block_until_ready(out)
    assert out.shape == (BATCH, N_TOKENS, D_MODEL)

    # 1) Tight structural check vs. a reference with identical bf16 operand
    #    rounding (only accumulation-order / transcendental ulps differ).
    ref_m = ref_encoder_matched(x, layer_params, final_gamma, final_beta, MM_DTYPE)
    err_m = float(jnp.max(jnp.abs(out - ref_m)))
    assert err_m < 1e-3, f"structural mismatch vs bf16-matched reference: {err_m}"

    # 2) Semantic check vs. the exact-f32 PyTorch-equivalent reference; the gap
    #    is only bf16 MXU-operand rounding (softmax math itself is exact f32).
    with jax.default_matmul_precision("highest"):
        ref_f = ref_encoder(x, layer_params, final_gamma, final_beta)
    err_f = float(jnp.max(jnp.abs(out - ref_f)))
    assert err_f < 8e-2, f"semantic mismatch vs f32 reference: {err_f}"

    print("KERNEL_OK")
</pallas_src>

<mosaic_0001>
module attributes {stable_mosaic.version = 11 : i64} {
  func.func @kernel(%arg0: i32, %arg1: i32, %arg2: memref<8x32xf32, #tpu.memory_space<vmem>>, %arg3: memref<1x32x96xbf16, #tpu.memory_space<vmem>>, %arg4: memref<1x1x96xf32, #tpu.memory_space<vmem>>, %arg5: memref<1x32x32xbf16, #tpu.memory_space<vmem>>, %arg6: memref<1x32x64xbf16, #tpu.memory_space<vmem>>, %arg7: memref<1x1x64xf32, #tpu.memory_space<vmem>>, %arg8: memref<1x64x32xbf16, #tpu.memory_space<vmem>>, %arg9: memref<1x6x32xf32, #tpu.memory_space<vmem>>, %arg10: memref<2x32xf32, #tpu.memory_space<vmem>>, %arg11: memref<8x32xf32, #tpu.memory_space<vmem>>, %arg12: memref<8x32xf32, #tpu.memory_space<vmem>>) attributes {dimension_semantics = [#tpu.dimension_semantics<parallel>, #tpu.dimension_semantics<arbitrary>], iteration_bounds = array<i64: 2, 2>, scalar_prefetch = 0 : i64, scratch_operands = 1 : i64, tpu.core_type = #tpu.core_type<tc>, window_params = [{transform_indices = @transform_0, window_bounds = array<i64: 8, 32>}, {transform_indices = @transform_1, window_bounds = array<i64: 1, 32, 96>}, {transform_indices = @transform_2, window_bounds = array<i64: 1, 1, 96>}, {transform_indices = @transform_3, window_bounds = array<i64: 1, 32, 32>}, {transform_indices = @transform_4, window_bounds = array<i64: 1, 32, 64>}, {transform_indices = @transform_5, window_bounds = array<i64: 1, 1, 64>}, {transform_indices = @transform_6, window_bounds = array<i64: 1, 64, 32>}, {transform_indices = @transform_7, window_bounds = array<i64: 1, 6, 32>}, {pipeline_mode = #tpu.pipeline_mode<synchronous>, transform_indices = @transform_8, window_bounds = array<i64: 2, 32>}, {transform_indices = @transform_9, window_bounds = array<i64: 8, 32>}]} {
    %c0_i32 = arith.constant 0 : i32
    %0 = arith.cmpi eq, %arg1, %c0_i32 : i32
    %1 = arith.extui %0 : i1 to i32
    %c0_i32_0 = arith.constant 0 : i32
    %2 = arith.cmpi ne, %1, %c0_i32_0 : i32
    scf.if %2 {
      %c0_55 = arith.constant 0 : index
      %c0_56 = arith.constant 0 : index
      %147 = vector.load %arg2[%c0_55, %c0_56] : memref<8x32xf32, #tpu.memory_space<vmem>>, vector<8x32xf32>
      %c0_57 = arith.constant 0 : index
      %c0_58 = arith.constant 0 : index
      %148 = vector.load %arg12[%c0_57, %c0_58] : memref<8x32xf32, #tpu.memory_space<vmem>>, vector<8x32xf32>
      tpu.vector_store %arg12[%c0_57, %c0_58], %147 {strides = array<i32>} : memref<8x32xf32, #tpu.memory_space<vmem>>, vector<8x32xf32>,
    } else {
    }
    %c0 = arith.constant 0 : index
    %c0_1 = arith.constant 0 : index
    %3 = vector.load %arg12[%c0, %c0_1] : memref<8x32xf32, #tpu.memory_space<vmem>>, vector<8x32xf32>
    %c0_2 = arith.constant 0 : index
    %c0_3 = arith.constant 0 : index
    %c0_4 = arith.constant 0 : index
    %4 = vector.load %arg9[%c0_2, %c0_3, %c0_4] : memref<1x6x32xf32, #tpu.memory_space<vmem>>, vector<1x1x32xf32>
    %5 = vector.shape_cast %4 : vector<1x1x32xf32> to vector<1x32xf32>
    %c0_5 = arith.constant 0 : index
    %c1 = arith.constant 1 : index
    %c0_6 = arith.constant 0 : index
    %6 = vector.load %arg9[%c0_5, %c1, %c0_6] : memref<1x6x32xf32, #tpu.memory_space<vmem>>, vector<1x1x32xf32>
    %7 = vector.shape_cast %6 : vector<1x1x32xf32> to vector<1x32xf32>
    %c0_7 = arith.constant 0 : index
    %c2 = arith.constant 2 : index
    %c0_8 = arith.constant 0 : index
    %8 = vector.load %arg9[%c0_7, %c2, %c0_8] : memref<1x6x32xf32, #tpu.memory_space<vmem>>, vector<1x1x32xf32>
    %9 = vector.shape_cast %8 : vector<1x1x32xf32> to vector<1x32xf32>
    %c0_9 = arith.constant 0 : index
    %c3 = arith.constant 3 : index
    %c0_10 = arith.constant 0 : index
    %10 = vector.load %arg9[%c0_9, %c3, %c0_10] : memref<1x6x32xf32, #tpu.memory_space<vmem>>, vector<1x1x32xf32>
    %11 = vector.shape_cast %10 : vector<1x1x32xf32> to vector<1x32xf32>
    %c0_11 = arith.constant 0 : index
    %c4 = arith.constant 4 : index
    %c0_12 = arith.constant 0 : index
    %12 = vector.load %arg9[%c0_11, %c4, %c0_12] : memref<1x6x32xf32, #tpu.memory_space<vmem>>, vector<1x1x32xf32>
    %13 = vector.shape_cast %12 : vector<1x1x32xf32> to vector<1x32xf32>
    %c0_13 = arith.constant 0 : index
    %c5 = arith.constant 5 : index
    %c0_14 = arith.constant 0 : index
    %14 = vector.load %arg9[%c0_13, %c5, %c0_14] : memref<1x6x32xf32, #tpu.memory_space<vmem>>, vector<1x1x32xf32>
    %15 = vector.shape_cast %14 : vector<1x1x32xf32> to vector<1x32xf32>
    %16 = arith.truncf %3 : vector<8x32xf32> to vector<8x32xbf16>
    %c0_15 = arith.constant 0 : index
    %c0_16 = arith.constant 0 : index
    %c0_17 = arith.constant 0 : index
    %17 = vector.load %arg3[%c0_15, %c0_16, %c0_17] : memref<1x32x96xbf16, #tpu.memory_space<vmem>>, vector<1x32x96xbf16>
    %18 = vector.shape_cast %17 : vector<1x32x96xbf16> to vector<32x96xbf16>
    %cst = arith.constant dense<0.000000e+00> : vector<8x96xf32>
    %19 = tpu.matmul %16, %18, %cst {dimension_numbers = #tpu.dot_dimension_numbers<[1], [0], [0], [1], [0, 0, 1, 1], [], []>} : vector<8x32xbf16>, vector<32x96xbf16>, vector<8x96xf32> -> vector<8x96xf32>
    %c0_18 = arith.constant 0 : index
    %c0_19 = arith.constant 0 : index
    %c0_20 = arith.constant 0 : index
    %20 = vector.load %arg4[%c0_18, %c0_19, %c0_20] : memref<1x1x96xf32, #tpu.memory_space<vmem>>, vector<1x1x96xf32>
    %21 = vector.shape_cast %20 : vector<1x1x96xf32> to vector<1x96xf32>
    %22 = vector.broadcast %21 : vector<1x96xf32> to vector<8x96xf32>
    %23 = arith.addf %19, %22 : vector<8x96xf32>
    %24 = arith.truncf %23 : vector<8x96xf32> to vector<8x96xbf16>
    %25 = vector.extract_strided_slice %24 {offsets = [0, 0], sizes = [8, 8], strides = [1, 1]} : vector<8x96xbf16> to vector<8x8xbf16>
    %26 = vector.extract_strided_slice %24 {offsets = [0, 8], sizes = [8, 8], strides = [1, 1]} : vector<8x96xbf16> to vector<8x8xbf16>
    %27 = vector.extract_strided_slice %24 {offsets = [0, 16], sizes = [8, 8], strides = [1, 1]} : vector<8x96xbf16> to vector<8x8xbf16>
    %28 = vector.extract_strided_slice %24 {offsets = [0, 24], sizes = [8, 8], strides = [1, 1]} : vector<8x96xbf16> to vector<8x8xbf16>
    %29 = vector.shape_cast %25 : vector<8x8xbf16> to vector<1x8x8xbf16>
    %30 = vector.shape_cast %26 : vector<8x8xbf16> to vector<1x8x8xbf16>
    %31 = vector.shape_cast %27 : vector<8x8xbf16> to vector<1x8x8xbf16>
    %32 = vector.shape_cast %28 : vector<8x8xbf16> to vector<1x8x8xbf16>
    %33 = tpu.concatenate %29, %30, %31, %32 in 0 : vector<1x8x8xbf16>, vector<1x8x8xbf16>, vector<1x8x8xbf16>, vector<1x8x8xbf16> -> vector<4x8x8xbf16>
    %34 = vector.extract_strided_slice %24 {offsets = [0, 32], sizes = [8, 8], strides = [1, 1]} : vector<8x96xbf16> to vector<8x8xbf16>
    %35 = vector.extract_strided_slice %24 {offsets = [0, 40], sizes = [8, 8], strides = [1, 1]} : vector<8x96xbf16> to vector<8x8xbf16>
    %36 = vector.extract_strided_slice %24 {offsets = [0, 48], sizes = [8, 8], strides = [1, 1]} : vector<8x96xbf16> to vector<8x8xbf16>
    %37 = vector.extract_strided_slice %24 {offsets = [0, 56], sizes = [8, 8], strides = [1, 1]} : vector<8x96xbf16> to vector<8x8xbf16>
    %38 = vector.shape_cast %34 : vector<8x8xbf16> to vector<1x8x8xbf16>
    %39 = vector.shape_cast %35 : vector<8x8xbf16> to vector<1x8x8xbf16>
    %40 = vector.shape_cast %36 : vector<8x8xbf16> to vector<1x8x8xbf16>
    %41 = vector.shape_cast %37 : vector<8x8xbf16> to vector<1x8x8xbf16>
    %42 = tpu.concatenate %38, %39, %40, %41 in 0 : vector<1x8x8xbf16>, vector<1x8x8xbf16>, vector<1x8x8xbf16>, vector<1x8x8xbf16> -> vector<4x8x8xbf16>
    %43 = vector.extract_strided_slice %24 {offsets = [0, 64], sizes = [8, 8], strides = [1, 1]} : vector<8x96xbf16> to vector<8x8xbf16>
    %44 = vector.extract_strided_slice %24 {offsets = [0, 72], sizes = [8, 8], strides = [1, 1]} : vector<8x96xbf16> to vector<8x8xbf16>
    %45 = vector.extract_strided_slice %24 {offsets = [0, 80], sizes = [8, 8], strides = [1, 1]} : vector<8x96xbf16> to vector<8x8xbf16>
    %46 = vector.extract_strided_slice %24 {offsets = [0, 88], sizes = [8, 8], strides = [1, 1]} : vector<8x96xbf16> to vector<8x8xbf16>
    %47 = vector.shape_cast %43 : vector<8x8xbf16> to vector<1x8x8xbf16>
    %48 = vector.shape_cast %44 : vector<8x8xbf16> to vector<1x8x8xbf16>
    %49 = vector.shape_cast %45 : vector<8x8xbf16> to vector<1x8x8xbf16>
    %50 = vector.shape_cast %46 : vector<8x8xbf16> to vector<1x8x8xbf16>
    %51 = tpu.concatenate %47, %48, %49, %50 in 0 : vector<1x8x8xbf16>, vector<1x8x8xbf16>, vector<1x8x8xbf16>, vector<1x8x8xbf16> -> vector<4x8x8xbf16>
    %cst_21 = arith.constant dense<0.000000e+00> : vector<4x8x8xf32>
    %52 = tpu.matmul %33, %42, %cst_21 {dimension_numbers = #tpu.dot_dimension_numbers<[2], [2], [1], [1], [0, 0, 0, 1, 1, 1], [0], [0]>} : vector<4x8x8xbf16>, vector<4x8x8xbf16>, vector<4x8x8xf32> -> vector<4x8x8xf32>
    %cst_22 = arith.constant 0.353553385 : f32
    %53 = vector.broadcast %cst_22 : f32 to vector<4x8x8xf32>
    %54 = arith.mulf %52, %53 : vector<4x8x8xf32>
    %cst_23 = arith.constant dense<0xFF800000> : vector<4x8xf32>
    %55 = vector.multi_reduction <maximumf>, %54, %cst_23 [2] : vector<4x8x8xf32> to vector<4x8xf32>
    %56 = vector.shape_cast %55 : vector<4x8xf32> to vector<4x8x1xf32>
    %57 = vector.broadcast %56 : vector<4x8x1xf32> to vector<4x8x8xf32>
    %58 = arith.subf %54, %57 : vector<4x8x8xf32>
    %59 = math.exp %58 : vector<4x8x8xf32>
    %cst_24 = arith.constant dense<0.000000e+00> : vector<4x8xf32>
    %60 = vector.multi_reduction <add>, %59, %cst_24 [2] : vector<4x8x8xf32> to vector<4x8xf32>
    %61 = vector.shape_cast %60 : vector<4x8xf32> to vector<4x8x1xf32>
    %62 = vector.broadcast %61 : vector<4x8x1xf32> to vector<4x8x8xf32>
    %63 = arith.divf %59, %62 : vector<4x8x8xf32>
    %64 = arith.truncf %63 : vector<4x8x8xf32> to vector<4x8x8xbf16>
    %cst_25 = arith.constant dense<0.000000e+00> : vector<4x8x8xf32>
    %65 = tpu.matmul %64, %51, %cst_25 {dimension_numbers = #tpu.dot_dimension_numbers<[2], [1], [1], [2], [0, 0, 0, 1, 1, 2], [0], [0]>} : vector<4x8x8xbf16>, vector<4x8x8xbf16>, vector<4x8x8xf32> -> vector<4x8x8xf32>
    %66 = vector.extract_strided_slice %65 {offsets = [0, 0, 0], sizes = [1, 8, 8], strides = [1, 1, 1]} : vector<4x8x8xf32> to vector<1x8x8xf32>
    %67 = vector.shape_cast %66 : vector<1x8x8xf32> to vector<8x8xf32>
    %68 = vector.extract_strided_slice %65 {offsets = [1, 0, 0], sizes = [1, 8, 8], strides = [1, 1, 1]} : vector<4x8x8xf32> to vector<1x8x8xf32>
    %69 = vector.shape_cast %68 : vector<1x8x8xf32> to vector<8x8xf32>
    %70 = vector.extract_strided_slice %65 {offsets = [2, 0, 0], sizes = [1, 8, 8], strides = [1, 1, 1]} : vector<4x8x8xf32> to vector<1x8x8xf32>
    %71 = vector.shape_cast %70 : vector<1x8x8xf32> to vector<8x8xf32>
    %72 = vector.extract_strided_slice %65 {offsets = [3, 0, 0], sizes = [1, 8, 8], strides = [1, 1, 1]} : vector<4x8x8xf32> to vector<1x8x8xf32>
    %73 = vector.shape_cast %72 : vector<1x8x8xf32> to vector<8x8xf32>
    %74 = tpu.concatenate %67, %69, %71, %73 in 1 : vector<8x8xf32>, vector<8x8xf32>, vector<8x8xf32>, vector<8x8xf32> -> vector<8x32xf32>
    %75 = arith.truncf %74 : vector<8x32xf32> to vector<8x32xbf16>
    %c0_26 = arith.constant 0 : index
    %c0_27 = arith.constant 0 : index
    %c0_28 = arith.constant 0 : index
    %76 = vector.load %arg5[%c0_26, %c0_27, %c0_28] : memref<1x32x32xbf16, #tpu.memory_space<vmem>>, vector<1x32x32xbf16>
    %77 = vector.shape_cast %76 : vector<1x32x32xbf16> to vector<32x32xbf16>
    %cst_29 = arith.constant dense<0.000000e+00> : vector<8x32xf32>
    %78 = tpu.matmul %75, %77, %cst_29 {dimension_numbers = #tpu.dot_dimension_numbers<[1], [0], [0], [1], [0, 0, 1, 1], [], []>} : vector<8x32xbf16>, vector<32x32xbf16>, vector<8x32xf32> -> vector<8x32xf32>
    %79 = vector.broadcast %5 : vector<1x32xf32> to vector<8x32xf32>
    %80 = arith.addf %78, %79 : vector<8x32xf32>
    %81 = arith.addf %3, %80 : vector<8x32xf32>
    %cst_30 = arith.constant dense<0.000000e+00> : vector<8xf32>
    %82 = vector.multi_reduction <add>, %81, %cst_30 [1] : vector<8x32xf32> to vector<8xf32>
    %83 = vector.shape_cast %82 : vector<8xf32> to vector<8x1xf32>
    %cst_31 = arith.constant 3.200000e+01 : f32
    %84 = vector.broadcast %cst_31 : f32 to vector<8x1xf32>
    %85 = arith.divf %83, %84 : vector<8x1xf32>
    %86 = vector.broadcast %85 : vector<8x1xf32> to vector<8x32xf32>
    %87 = arith.subf %81, %86 : vector<8x32xf32>
    %88 = arith.mulf %87, %87 : vector<8x32xf32>
    %cst_32 = arith.constant dense<0.000000e+00> : vector<8xf32>
    %89 = vector.multi_reduction <add>, %88, %cst_32 [1] : vector<8x32xf32> to vector<8xf32>
    %90 = vector.shape_cast %89 : vector<8xf32> to vector<8x1xf32>
    %cst_33 = arith.constant 3.200000e+01 : f32
    %91 = vector.broadcast %cst_33 : f32 to vector<8x1xf32>
    %92 = arith.divf %90, %91 : vector<8x1xf32>
    %93 = vector.broadcast %85 : vector<8x1xf32> to vector<8x32xf32>
    %94 = arith.subf %81, %93 : vector<8x32xf32>
    %cst_34 = arith.constant 9.99999974E-6 : f32
    %95 = vector.broadcast %cst_34 : f32 to vector<8x1xf32>
    %96 = arith.addf %92, %95 : vector<8x1xf32>
    %97 = math.rsqrt %96 : vector<8x1xf32>
    %98 = vector.broadcast %97 : vector<8x1xf32> to vector<8x32xf32>
    %99 = arith.mulf %94, %98 : vector<8x32xf32>
    %100 = vector.broadcast %9 : vector<1x32xf32> to vector<8x32xf32>
    %101 = arith.mulf %99, %100 : vector<8x32xf32>
    %102 = vector.broadcast %11 : vector<1x32xf32> to vector<8x32xf32>
    %103 = arith.addf %101, %102 : vector<8x32xf32>
    %104 = arith.truncf %103 : vector<8x32xf32> to vector<8x32xbf16>
    %c0_35 = arith.constant 0 : index
    %c0_36 = arith.constant 0 : index
    %c0_37 = arith.constant 0 : index
    %105 = vector.load %arg6[%c0_35, %c0_36, %c0_37] : memref<1x32x64xbf16, #tpu.memory_space<vmem>>, vector<1x32x64xbf16>
    %106 = vector.shape_cast %105 : vector<1x32x64xbf16> to vector<32x64xbf16>
    %cst_38 = arith.constant dense<0.000000e+00> : vector<8x64xf32>
    %107 = tpu.matmul %104, %106, %cst_38 {dimension_numbers = #tpu.dot_dimension_numbers<[1], [0], [0], [1], [0, 0, 1, 1], [], []>} : vector<8x32xbf16>, vector<32x64xbf16>, vector<8x64xf32> -> vector<8x64xf32>
    %c0_39 = arith.constant 0 : index
    %c0_40 = arith.constant 0 : index
    %c0_41 = arith.constant 0 : index
    %108 = vector.load %arg7[%c0_39, %c0_40, %c0_41] : memref<1x1x64xf32, #tpu.memory_space<vmem>>, vector<1x1x64xf32>
    %109 = vector.shape_cast %108 : vector<1x1x64xf32> to vector<1x64xf32>
    %110 = vector.broadcast %109 : vector<1x64xf32> to vector<8x64xf32>
    %111 = arith.addf %107, %110 : vector<8x64xf32>
    %cst_42 = arith.constant 0.000000e+00 : f32
    %112 = vector.broadcast %cst_42 : f32 to vector<8x64xf32>
    %113 = arith.maximumf %111, %112 : vector<8x64xf32>
    %114 = arith.truncf %113 : vector<8x64xf32> to vector<8x64xbf16>
    %c0_43 = arith.constant 0 : index
    %c0_44 = arith.constant 0 : index
    %c0_45 = arith.constant 0 : index
    %115 = vector.load %arg8[%c0_43, %c0_44, %c0_45] : memref<1x64x32xbf16, #tpu.memory_space<vmem>>, vector<1x64x32xbf16>
    %116 = vector.shape_cast %115 : vector<1x64x32xbf16> to vector<64x32xbf16>
    %cst_46 = arith.constant dense<0.000000e+00> : vector<8x32xf32>
    %117 = tpu.matmul %114, %116, %cst_46 {dimension_numbers = #tpu.dot_dimension_numbers<[1], [0], [0], [1], [0, 0, 1, 1], [], []>} : vector<8x64xbf16>, vector<64x32xbf16>, vector<8x32xf32> -> vector<8x32xf32>
    %118 = vector.broadcast %7 : vector<1x32xf32> to vector<8x32xf32>
    %119 = arith.addf %117, %118 : vector<8x32xf32>
    %120 = arith.addf %103, %119 : vector<8x32xf32>
    %cst_47 = arith.constant dense<0.000000e+00> : vector<8xf32>
    %121 = vector.multi_reduction <add>, %120, %cst_47 [1] : vector<8x32xf32> to vector<8xf32>
    %122 = vector.shape_cast %121 : vector<8xf32> to vector<8x1xf32>
    %cst_48 = arith.constant 3.200000e+01 : f32
    %123 = vector.broadcast %cst_48 : f32 to vector<8x1xf32>
    %124 = arith.divf %122, %123 : vector<8x1xf32>
    %125 = vector.broadcast %124 : vector<8x1xf32> to vector<8x32xf32>
    %126 = arith.subf %120, %125 : vector<8x32xf32>
    %127 = arith.mulf %126, %126 : vector<8x32xf32>
    %cst_49 = arith.constant dense<0.000000e+00> : vector<8xf32>
    %128 = vector.multi_reduction <add>, %127, %cst_49 [1] : vector<8x32xf32> to vector<8xf32>
    %129 = vector.shape_cast %128 : vector<8xf32> to vector<8x1xf32>
    %cst_50 = arith.constant 3.200000e+01 : f32
    %130 = vector.broadcast %cst_50 : f32 to vector<8x1xf32>
    %131 = arith.divf %129, %130 : vector<8x1xf32>
    %132 = vector.broadcast %124 : vector<8x1xf32> to vector<8x32xf32>
    %133 = arith.subf %120, %132 : vector<8x32xf32>
    %cst_51 = arith.constant 9.99999974E-6 : f32
    %134 = vector.broadcast %cst_51 : f32 to vector<8x1xf32>
    %135 = arith.addf %131, %134 : vector<8x1xf32>
    %136 = math.rsqrt %135 : vector<8x1xf32>
    %137 = vector.broadcast %136 : vector<8x1xf32> to vector<8x32xf32>
    %138 = arith.mulf %133, %137 : vector<8x32xf32>
    %139 = vector.broadcast %13 : vector<1x32xf32> to vector<8x32xf32>
    %140 = arith.mulf %138, %139 : vector<8x32xf32>
    %141 = vector.broadcast %15 : vector<1x32xf32> to vector<8x32xf32>
    %142 = arith.addf %140, %141 : vector<8x32xf32>
    %c0_52 = arith.constant 0 : index
    %c0_53 = arith.constant 0 : index
    %143 = vector.load %arg12[%c0_52, %c0_53] : memref<8x32xf32, #tpu.memory_space<vmem>>, vector<8x32xf32>
    tpu.vector_store %arg12[%c0_52, %c0_53], %142 {strides = array<i32>} : memref<8x32xf32, #tpu.memory_space<vmem>>, vector<8x32xf32>,
    %c1_i32 = arith.constant 1 : i32
    %144 = arith.cmpi eq, %arg1, %c1_i32 : i32
    %145 = arith.extui %144 : i1 to i32
    %c0_i32_54 = arith.constant 0 : i32
    %146 = arith.cmpi ne, %145, %c0_i32_54 : i32
    scf.if %146 {
      %c0_55 = arith.constant 0 : index
      %c0_56 = arith.constant 0 : index
      %147 = vector.load %arg10[%c0_55, %c0_56] : memref<2x32xf32, #tpu.memory_space<vmem>>, vector<1x32xf32>
      %c1_57 = arith.constant 1 : index
      %c0_58 = arith.constant 0 : index
      %148 = vector.load %arg10[%c1_57, %c0_58] : memref<2x32xf32, #tpu.memory_space<vmem>>, vector<1x32xf32>
      %cst_59 = arith.constant dense<0.000000e+00> : vector<8xf32>
      %149 = vector.multi_reduction <add>, %142, %cst_59 [1] : vector<8x32xf32> to vector<8xf32>
      %150 = vector.shape_cast %149 : vector<8xf32> to vector<8x1xf32>
      %cst_60 = arith.constant 3.200000e+01 : f32
      %151 = vector.broadcast %cst_60 : f32 to vector<8x1xf32>
      %152 = arith.divf %150, %151 : vector<8x1xf32>
      %153 = vector.broadcast %152 : vector<8x1xf32> to vector<8x32xf32>
      %154 = arith.subf %142, %153 : vector<8x32xf32>
      %155 = arith.mulf %154, %154 : vector<8x32xf32>
      %cst_61 = arith.constant dense<0.000000e+00> : vector<8xf32>
      %156 = vector.multi_reduction <add>, %155, %cst_61 [1] : vector<8x32xf32> to vector<8xf32>
      %157 = vector.shape_cast %156 : vector<8xf32> to vector<8x1xf32>
      %cst_62 = arith.constant 3.200000e+01 : f32
      %158 = vector.broadcast %cst_62 : f32 to vector<8x1xf32>
      %159 = arith.divf %157, %158 : vector<8x1xf32>
      %160 = vector.broadcast %152 : vector<8x1xf32> to vector<8x32xf32>
      %161 = arith.subf %142, %160 : vector<8x32xf32>
      %cst_63 = arith.constant 9.99999974E-6 : f32
      %162 = vector.broadcast %cst_63 : f32 to vector<8x1xf32>
      %163 = arith.addf %159, %162 : vector<8x1xf32>
      %164 = math.rsqrt %163 : vector<8x1xf32>
      %165 = vector.broadcast %164 : vector<8x1xf32> to vector<8x32xf32>
      %166 = arith.mulf %161, %165 : vector<8x32xf32>
      %167 = vector.broadcast %147 : vector<1x32xf32> to vector<8x32xf32>
      %168 = arith.mulf %166, %167 : vector<8x32xf32>
      %169 = vector.broadcast %148 : vector<1x32xf32> to vector<8x32xf32>
      %170 = arith.addf %168, %169 : vector<8x32xf32>
      %c0_64 = arith.constant 0 : index
      %c0_65 = arith.constant 0 : index
      %171 = vector.load %arg11[%c0_64, %c0_65] : memref<8x32xf32, #tpu.memory_space<vmem>>, vector<8x32xf32>
      tpu.vector_store %arg11[%c0_64, %c0_65], %170 {strides = array<i32>} : memref<8x32xf32, #tpu.memory_space<vmem>>, vector<8x32xf32>,
    } else {
    }
    return
  }
  func.func @transform_0(%arg0: i32, %arg1: i32) -> (i32, i32) {
    %c0_i32 = arith.constant 0 : i32
    %c0_i32_0 = arith.constant 0 : i32
    return %arg0, %c0_i32 : i32, i32
  }
  func.func @transform_1(%arg0: i32, %arg1: i32) -> (i32, i32, i32) {
    %c0_i32 = arith.constant 0 : i32
    %c0_i32_0 = arith.constant 0 : i32
    %c0_i32_1 = arith.constant 0 : i32
    return %arg1, %c0_i32, %c0_i32_0 : i32, i32, i32
  }
  func.func @transform_2(%arg0: i32, %arg1: i32) -> (i32, i32, i32) {
    %c0_i32 = arith.constant 0 : i32
    %c0_i32_0 = arith.constant 0 : i32
    %c0_i32_1 = arith.constant 0 : i32
    return %arg1, %c0_i32, %c0_i32_0 : i32, i32, i32
  }
  func.func @transform_3(%arg0: i32, %arg1: i32) -> (i32, i32, i32) {
    %c0_i32 = arith.constant 0 : i32
    %c0_i32_0 = arith.constant 0 : i32
    %c0_i32_1 = arith.constant 0 : i32
    return %arg1, %c0_i32, %c0_i32_0 : i32, i32, i32
  }
  func.func @transform_4(%arg0: i32, %arg1: i32) -> (i32, i32, i32) {
    %c0_i32 = arith.constant 0 : i32
    %c0_i32_0 = arith.constant 0 : i32
    %c0_i32_1 = arith.constant 0 : i32
    return %arg1, %c0_i32, %c0_i32_0 : i32, i32, i32
  }
  func.func @transform_5(%arg0: i32, %arg1: i32) -> (i32, i32, i32) {
    %c0_i32 = arith.constant 0 : i32
    %c0_i32_0 = arith.constant 0 : i32
    %c0_i32_1 = arith.constant 0 : i32
    return %arg1, %c0_i32, %c0_i32_0 : i32, i32, i32
  }
  func.func @transform_6(%arg0: i32, %arg1: i32) -> (i32, i32, i32) {
    %c0_i32 = arith.constant 0 : i32
    %c0_i32_0 = arith.constant 0 : i32
    %c0_i32_1 = arith.constant 0 : i32
    return %arg1, %c0_i32, %c0_i32_0 : i32, i32, i32
  }
  func.func @transform_7(%arg0: i32, %arg1: i32) -> (i32, i32, i32) {
    %c0_i32 = arith.constant 0 : i32
    %c0_i32_0 = arith.constant 0 : i32
    %c0_i32_1 = arith.constant 0 : i32
    return %arg1, %c0_i32, %c0_i32_0 : i32, i32, i32
  }
  func.func @transform_8(%arg0: i32, %arg1: i32) -> (i32, i32) {
    %c0_i32 = arith.constant 0 : i32
    %c0_i32_0 = arith.constant 0 : i32
    %c0_i32_1 = arith.constant 0 : i32
    return %c0_i32, %c0_i32_0 : i32, i32
  }
  func.func @transform_9(%arg0: i32, %arg1: i32) -> (i32, i32) {
    %c0_i32 = arith.constant 0 : i32
    %c0_i32_0 = arith.constant 0 : i32
    return %arg0, %c0_i32 : i32, i32
  }
}

</mosaic_0001>

<llo_original>
// kernel: tpu_custom_call.1
$region0: #{tpu_custom_call.1}
  #allocation0 [shape = 'u32[]', space=smem, size = 0x4, offset = 0x4, fixed_abs, tag = 'smem constant byte address 0x4 - core index']
  #allocation1 [shape = 'u32[72,128]{1,0:T(1,128)}', space=vmem, size = 0x9000, scoped, tag = 'internal scratch']
  #allocation2 [shape = 'f32[8,32]{1,0:T(8,128)}', space=vmem, size = 0x1000, scoped, tag = 'scratch operand']
  %s0 = inlined_call_operand.hbm [shape: f32[16,32], index: 0, kind: input, shape index: {}]
  %s1 = inlined_call_operand.vmem [shape: bf16[2,32,96], index: 1, kind: input, shape index: {}]
  %s2 = inlined_call_operand.hbm [shape: f32[2,1,96], index: 2, kind: input, shape index: {}]
  %s3 = inlined_call_operand.vmem [shape: bf16[2,32,32], index: 3, kind: input, shape index: {}]
  %s4 = inlined_call_operand.vmem [shape: bf16[2,32,64], index: 4, kind: input, shape index: {}]
  %s5 = inlined_call_operand.hbm [shape: f32[2,1,64], index: 5, kind: input, shape index: {}]
  %s6 = inlined_call_operand.vmem [shape: bf16[2,64,32], index: 6, kind: input, shape index: {}]
  %s7 = inlined_call_operand.vmem [shape: f32[2,6,32], index: 7, kind: input, shape index: {}]
  %s8 = inlined_call_operand.vmem [shape: f32[2,32], index: 8, kind: input, shape index: {}]
  %s9 = inlined_call_operand.hbm [shape: f32[16,32], index: 9, kind: output, shape index: {}]
  %s10 = sld [smem:[#allocation0]]
  $region89: #{tpu_custom_call.1} parent=0
    _
  %s12 = ssub.s32 1, %s10
  %s13 = scalar_select 0, %s12, %s10
  $region1: #{tpu_custom_call.1} parent=0
    #allocation3 [shape = 'u8[8192]{0}', space=vmem, size = 0x2000, scoped, tag = 'input window, operand 0']
    #allocation4 [shape = 's32[2]{0}', space=sflag, size = 0x8, scoped, tag = 'scoped memory for tpu_custom_call.1']
    #allocation5 [shape = 's32[2]{0}', space=sflag, size = 0x8, scoped, tag = 'scoped memory for tpu_custom_call.1']
    #allocation6 [shape = 'u8[1024]{0}', space=vmem, size = 0x400, scoped, tag = 'input window, operand 2']
    #allocation7 [shape = 's32[2]{0}', space=sflag, size = 0x8, scoped, tag = 'scoped memory for tpu_custom_call.1']
    #allocation8 [shape = 'u8[1024]{0}', space=vmem, size = 0x400, scoped, tag = 'input window, operand 5']
    #allocation9 [shape = 'u8[8192]{0}', space=vmem, size = 0x2000, scoped, tag = 'output window, operand 0']
    %14 = vsyncpa [#allocation4], 0
    %s15 = scalar_lea.sflag [#allocation4], 1
    %16 = vsyncpa %s15, 0
    %17 = vsyncpa [#allocation7], 0
    %s18 = scalar_lea.sflag [#allocation7], 1
    %19 = vsyncpa %s18, 0
    %20 = vsyncpa [#allocation5], 0
    %s21 = scalar_lea.sflag [#allocation5], 1
    %22 = vsyncpa %s21, 0
    loop: start=0, step=1, limit=6
    $region2: #{tpu_custom_call.1} parent=1 // loop_pre_header
      _
    $region3: #{tpu_custom_call.1} parent=1 // loop_header
      %s24 = sphi 0, %s28
      %p25 = scmp.ge.s32.totalorder %s24, 6
      %s31 = sphi 0, %s43
      %s32 = sphi 0, %s39
      %s33 = sphi 0, %s31
      %s34 = sphi 0, %s32
      %s35 = sphi 0, %s33
      %s36 = sphi 0, %s34
      %s46 = sphi 0, %s48
      %s49 = sphi 0, %s46
      %s50 = sphi 0, %s49
      %s66 = sphi 0, %s50
      %s72 = sphi 0, %s74
      %s75 = sphi 0, %s72
      %s76 = sphi 0, %s75
      %s92 = sphi 0, %s76
      %s98 = sphi 0, %s100
      %s101 = sphi 0, %s98
      %s102 = sphi 0, %s101
      %s118 = sphi 0, %s102
      %s124 = sphi 0, %s126
      %s127 = sphi 0, %s124
      %s128 = sphi 0, %s127
      %s144 = sphi 0, %s128
      %s150 = sphi 0, %s152
      %s153 = sphi 0, %s150
      %s154 = sphi 0, %s153
      %s170 = sphi 0, %s154
      %s176 = sphi 0, %s178
      %s179 = sphi 0, %s176
      %s180 = sphi 0, %s179
      %s196 = sphi 0, %s180
      %s202 = sphi 0, %s204
      %s205 = sphi 0, %s202
      %s206 = sphi 0, %s205
      %s222 = sphi 0, %s206
      %s228 = sphi 0, %s230
      %s231 = sphi 0, %s228
      %s232 = sphi 0, %s231
      %s248 = sphi 0, %s232
      %s252 = sphi 0, %s252
      %s254 = sphi 0, %s252
      %s255 = sphi 0, %s254
      %s269 = sphi 0, %s255
      %s275 = sphi 0, %s277
      %s278 = sphi 0, %s275
      %s279 = sphi 0, %s278
      %s295 = sphi 0, %s279
    $region4: #{tpu_custom_call.1} parent=1 // loop_header_branch
      %27 = sbr.rel (%p25) target = $region8
    $region5: #{tpu_custom_call.1} parent=1 // loop_body
      %s29 = ssub.s32 %s24, 1
      %s30 = ssub.s32 %s24, 2
      %s37 = sadd.s32 1, %s32
      %p38 = scmp.ge.s32.totalorder %s37, 2
      %s39 = scalar_select %p38, 0, %s37
      %s40 = sadd.s32 1, %s31
      %s41 = scalar_select %p38, %s40, %s31
      %p42 = scmp.ge.s32.totalorder %s41, 2
      %s43 = scalar_select %p42, 0, %s41
      %s44 = ssub.s32 %s31, %s43
      %p45 = scmp.eq.s32.totalorder %s44, 0
      %s47 = sadd.s32 %s46, 1
      %s48 = scalar_select %p45, %s46, %s47
      %p51 = pneg %p45
      %p52 = scmp.eq.s32.totalorder %s24, 3
      %p53 = por %p51, %p52
      %p54 = scmp.ne.s32.totalorder %s46, %s49
      %p55 = scmp.eq.s32.totalorder %s24, 0
      %p56 = por %p54, %p55
      %p57 = scmp.ne.s32.totalorder %s46, %s49
      %p58 = scmp.eq.s32.totalorder %s29, 3
      %p59 = por %p57, %p58
      %p60 = scmp.ne.s32.totalorder %s49, %s50
      %p61 = scmp.eq.s32.totalorder %s29, 0
      %p62 = por %p60, %p61
      %p63 = scmp.ne.s32.totalorder %s49, %s50
      %p64 = scmp.eq.s32.totalorder %s30, 3
      %p65 = por %p63, %p64
      %p67 = scmp.ne.s32.totalorder %s50, %s66
      %p68 = scmp.eq.s32.totalorder %s30, 0
      %p69 = por %p67, %p68
      %s70 = ssub.s32 %s32, %s39
      %p71 = scmp.eq.s32.totalorder %s70, 0
      %s73 = sadd.s32 %s72, 1
      %s74 = scalar_select %p71, %s72, %s73
      %p77 = pneg %p71
      %p78 = scmp.eq.s32.totalorder %s24, 3
      %p79 = por %p77, %p78
      %p80 = scmp.ne.s32.totalorder %s72, %s75
      %p81 = scmp.eq.s32.totalorder %s24, 0
      %p82 = por %p80, %p81
      %p83 = scmp.ne.s32.totalorder %s72, %s75
      %p84 = scmp.eq.s32.totalorder %s29, 3
      %p85 = por %p83, %p84
      %p86 = scmp.ne.s32.totalorder %s75, %s76
      %p87 = scmp.eq.s32.totalorder %s29, 0
      %p88 = por %p86, %p87
      %p89 = scmp.ne.s32.totalorder %s75, %s76
      %p90 = scmp.eq.s32.totalorder %s30, 3
      %p91 = por %p89, %p90
      %p93 = scmp.ne.s32.totalorder %s76, %s92
      %p94 = scmp.eq.s32.totalorder %s30, 0
      %p95 = por %p93, %p94
      %s96 = ssub.s32 %s32, %s39
      %p97 = scmp.eq.s32.totalorder %s96, 0
      %s99 = sadd.s32 %s98, 1
      %s100 = scalar_select %p97, %s98, %s99
      %p103 = pneg %p97
      %p104 = scmp.eq.s32.totalorder %s24, 3
      %p105 = por %p103, %p104
      %p106 = scmp.ne.s32.totalorder %s98, %s101
      %p107 = scmp.eq.s32.totalorder %s24, 0
      %p108 = por %p106, %p107
      %p109 = scmp.ne.s32.totalorder %s98, %s101
      %p110 = scmp.eq.s32.totalorder %s29, 3
      %p111 = por %p109, %p110
      %p112 = scmp.ne.s32.totalorder %s101, %s102
      %p113 = scmp.eq.s32.totalorder %s29, 0
      %p114 = por %p112, %p113
      %p115 = scmp.ne.s32.totalorder %s101, %s102
      %p116 = scmp.eq.s32.totalorder %s30, 3
      %p117 = por %p115, %p116
      %p119 = scmp.ne.s32.totalorder %s102, %s118
      %p120 = scmp.eq.s32.totalorder %s30, 0
      %p121 = por %p119, %p120
      %s122 = ssub.s32 %s32, %s39
      %p123 = scmp.eq.s32.totalorder %s122, 0
      %s125 = sadd.s32 %s124, 1
      %s126 = scalar_select %p123, %s124, %s125
      %p129 = pneg %p123
      %p130 = scmp.eq.s32.totalorder %s24, 3
      %p131 = por %p129, %p130
      %p132 = scmp.ne.s32.totalorder %s124, %s127
      %p133 = scmp.eq.s32.totalorder %s24, 0
      %p134 = por %p132, %p133
      %p135 = scmp.ne.s32.totalorder %s124, %s127
      %p136 = scmp.eq.s32.totalorder %s29, 3
      %p137 = por %p135, %p136
      %p138 = scmp.ne.s32.totalorder %s127, %s128
      %p139 = scmp.eq.s32.totalorder %s29, 0
      %p140 = por %p138, %p139
      %p141 = scmp.ne.s32.totalorder %s127, %s128
      %p142 = scmp.eq.s32.totalorder %s30, 3
      %p143 = por %p141, %p142
      %p145 = scmp.ne.s32.totalorder %s128, %s144
      %p146 = scmp.eq.s32.totalorder %s30, 0
      %p147 = por %p145, %p146
      %s148 = ssub.s32 %s32, %s39
      %p149 = scmp.eq.s32.totalorder %s148, 0
      %s151 = sadd.s32 %s150, 1
      %s152 = scalar_select %p149, %s150, %s151
      %p155 = pneg %p149
      %p156 = scmp.eq.s32.totalorder %s24, 3
      %p157 = por %p155, %p156
      %p158 = scmp.ne.s32.totalorder %s150, %s153
      %p159 = scmp.eq.s32.totalorder %s24, 0
      %p160 = por %p158, %p159
      %p161 = scmp.ne.s32.totalorder %s150, %s153
      %p162 = scmp.eq.s32.totalorder %s29, 3
      %p163 = por %p161, %p162
      %p164 = scmp.ne.s32.totalorder %s153, %s154
      %p165 = scmp.eq.s32.totalorder %s29, 0
      %p166 = por %p164, %p165
      %p167 = scmp.ne.s32.totalorder %s153, %s154
      %p168 = scmp.eq.s32.totalorder %s30, 3
      %p169 = por %p167, %p168
      %p171 = scmp.ne.s32.totalorder %s154, %s170
      %p172 = scmp.eq.s32.totalorder %s30, 0
      %p173 = por %p171, %p172
      %s174 = ssub.s32 %s32, %s39
      %p175 = scmp.eq.s32.totalorder %s174, 0
      %s177 = sadd.s32 %s176, 1
      %s178 = scalar_select %p175, %s176, %s177
      %p181 = pneg %p175
      %p182 = scmp.eq.s32.totalorder %s24, 3
      %p183 = por %p181, %p182
      %p184 = scmp.ne.s32.totalorder %s176, %s179
      %p185 = scmp.eq.s32.totalorder %s24, 0
      %p186 = por %p184, %p185
      %p187 = scmp.ne.s32.totalorder %s176, %s179
      %p188 = scmp.eq.s32.totalorder %s29, 3
      %p189 = por %p187, %p188
      %p190 = scmp.ne.s32.totalorder %s179, %s180
      %p191 = scmp.eq.s32.totalorder %s29, 0
      %p192 = por %p190, %p191
      %p193 = scmp.ne.s32.totalorder %s179, %s180
      %p194 = scmp.eq.s32.totalorder %s30, 3
      %p195 = por %p193, %p194
      %p197 = scmp.ne.s32.totalorder %s180, %s196
      %p198 = scmp.eq.s32.totalorder %s30, 0
      %p199 = por %p197, %p198
      %s200 = ssub.s32 %s32, %s39
      %p201 = scmp.eq.s32.totalorder %s200, 0
      %s203 = sadd.s32 %s202, 1
      %s204 = scalar_select %p201, %s202, %s203
      %p207 = pneg %p201
      %p208 = scmp.eq.s32.totalorder %s24, 3
      %p209 = por %p207, %p208
      %p210 = scmp.ne.s32.totalorder %s202, %s205
      %p211 = scmp.eq.s32.totalorder %s24, 0
      %p212 = por %p210, %p211
      %p213 = scmp.ne.s32.totalorder %s202, %s205
      %p214 = scmp.eq.s32.totalorder %s29, 3
      %p215 = por %p213, %p214
      %p216 = scmp.ne.s32.totalorder %s205, %s206
      %p217 = scmp.eq.s32.totalorder %s29, 0
      %p218 = por %p216, %p217
      %p219 = scmp.ne.s32.totalorder %s205, %s206
      %p220 = scmp.eq.s32.totalorder %s30, 3
      %p221 = por %p219, %p220
      %p223 = scmp.ne.s32.totalorder %s206, %s222
      %p224 = scmp.eq.s32.totalorder %s30, 0
      %p225 = por %p223, %p224
      %s226 = ssub.s32 %s32, %s39
      %p227 = scmp.eq.s32.totalorder %s226, 0
      %s229 = sadd.s32 %s228, 1
      %s230 = scalar_select %p227, %s228, %s229
      %p233 = pneg %p227
      %p234 = scmp.eq.s32.totalorder %s24, 3
      %p235 = por %p233, %p234
      %p236 = scmp.ne.s32.totalorder %s228, %s231
      %p237 = scmp.eq.s32.totalorder %s24, 0
      %p238 = por %p236, %p237
      %p239 = scmp.ne.s32.totalorder %s228, %s231
      %p240 = scmp.eq.s32.totalorder %s29, 3
      %p241 = por %p239, %p240
      %p242 = scmp.ne.s32.totalorder %s231, %s232
      %p243 = scmp.eq.s32.totalorder %s29, 0
      %p244 = por %p242, %p243
      %p245 = scmp.ne.s32.totalorder %s231, %s232
      %p246 = scmp.eq.s32.totalorder %s30, 3
      %p247 = por %p245, %p246
      %p249 = scmp.ne.s32.totalorder %s232, %s248
      %p250 = scmp.eq.s32.totalorder %s30, 0
      %p251 = por %p249, %p250
      %s253 = sadd.s32 %s252, 1
      %p256 = scmp.eq.s32.totalorder %s24, 3
      %p257 = scmp.ne.s32.totalorder %s252, %s254
      %p258 = scmp.eq.s32.totalorder %s24, 0
      %p259 = por %p257, %p258
      %p260 = scmp.ne.s32.totalorder %s252, %s254
      %p261 = scmp.eq.s32.totalorder %s29, 3
      %p262 = por %p260, %p261
      %p263 = scmp.ne.s32.totalorder %s254, %s255
      %p264 = scmp.eq.s32.totalorder %s29, 0
      %p265 = por %p263, %p264
      %p266 = scmp.ne.s32.totalorder %s254, %s255
      %p267 = scmp.eq.s32.totalorder %s30, 3
      %p268 = por %p266, %p267
      %p270 = scmp.ne.s32.totalorder %s255, %s269
      %p271 = scmp.eq.s32.totalorder %s30, 0
      %p272 = por %p270, %p271
      %s273 = ssub.s32 %s31, %s43
      %p274 = scmp.eq.s32.totalorder %s273, 0
      %s276 = sadd.s32 %s275, 1
      %s277 = scalar_select %p274, %s275, %s276
      %p280 = pneg %p274
      %p281 = scmp.eq.s32.totalorder %s24, 3
      %p282 = por %p280, %p281
      %p283 = scmp.ne.s32.totalorder %s275, %s278
      %p284 = scmp.eq.s32.totalorder %s24, 0
      %p285 = por %p283, %p284
      %p286 = scmp.ne.s32.totalorder %s275, %s278
      %p287 = scmp.eq.s32.totalorder %s29, 3
      %p288 = por %p286, %p287
      %p289 = scmp.ne.s32.totalorder %s278, %s279
      %p290 = scmp.eq.s32.totalorder %s29, 0
      %p291 = por %p289, %p290
      %p292 = scmp.ne.s32.totalorder %s278, %s279
      %p293 = scmp.eq.s32.totalorder %s30, 3
      %p294 = por %p292, %p293
      %p296 = scmp.ne.s32.totalorder %s279, %s295
      %p297 = scmp.eq.s32.totalorder %s30, 0
      %p298 = por %p296, %p297
      %p299 = scmp.le.s32.totalorder 1, %s24
      %p300 = scmp.lt.s32.totalorder %s24, 5
      %p301 = pnand %p299, %p300
      %p302 = pneg %p301
      // Predicated region
      $region9: #{tpu_custom_call.1} parent=5 // pred_check
        _
      $region10: #{tpu_custom_call.1} parent=5 // pred_check_branch
        %304 = sbr.rel (%p301) target = $region12
      $region11: #{tpu_custom_call.1} parent=5 // pred_region
        %s305 = ssub.s32 %s24, 1
        // Predicated region
        $region13: #{tpu_custom_call.1} parent=11 // pred_check
          %p306 = pneg %p265
        $region14: #{tpu_custom_call.1} parent=11 // pred_check_branch
          %308 = sbr.rel (%p306) target = $region16
        $region15: #{tpu_custom_call.1} parent=11 // pred_region
          _
        $region16: #{tpu_custom_call.1} parent=11 // pred_fallthru
          _
      $region12: #{tpu_custom_call.1} parent=5 // pred_fallthru
        _
      %p309 = scmp.lt.s32.totalorder %s24, 4
      // Predicated region
      $region17: #{tpu_custom_call.1} parent=5 // pred_check
        %p310 = pneg %p309
      $region18: #{tpu_custom_call.1} parent=5 // pred_check_branch
        %312 = sbr.rel (%p310) target = $region20
      $region19: #{tpu_custom_call.1} parent=5 // pred_region
        // Predicated region
        $region21: #{tpu_custom_call.1} parent=19 // pred_check
          %p313 = pneg %p56
        $region22: #{tpu_custom_call.1} parent=19 // pred_check_branch
          %315 = sbr.rel (%p313) target = $region24
        $region23: #{tpu_custom_call.1} parent=19 // pred_region
          %s316 = sand.u32 %s46, 1
          %s317 = scalar_lea.sflag [#allocation4], %s316
          %s318 = sand.u32 %s46, 1
          %s319 = smul.addr %s318, 8
          %s320 = scalar_lea.vmem [#allocation3], %s319
          %322 = vsyncadd %s317, 0
          %s323 = smul.addr %s31, 8
          %s324 = scalar_lea.hbm %s0, %s323
          %s326 = sshll.u32 %s324, 4
          %s327 = int_to_ptr.hbm [resolvable:$true] %s326
          %s328 = sshll.u32 %s320, 4
          %s329 = int_to_ptr.vmem [resolvable:$true] %s328
          %331 = dma.hbm_to_vmem [thread:$0]  %s327, 128, %s329, %s317
        $region24: #{tpu_custom_call.1} parent=19 // pred_fallthru
          _
        // Predicated region
        $region25: #{tpu_custom_call.1} parent=19 // pred_check
          %p332 = pneg %p82
        $region26: #{tpu_custom_call.1} parent=19 // pred_check_branch
          %334 = sbr.rel (%p332) target = $region28
        $region27: #{tpu_custom_call.1} parent=19 // pred_region
          %p335 = scmp.lt.s32.totalorder %s32, 1
          %s336 = scalar_select %p335, %s32, 1
          %s337 = smul.addr %s336, 4
          %s338 = smul.addr %s337, 4
          %s339 = scalar_lea.vmem %s1, %s338
        $region28: #{tpu_custom_call.1} parent=19 // pred_fallthru
          _
        // Predicated region
        $region29: #{tpu_custom_call.1} parent=19 // pred_check
          %p340 = pneg %p108
        $region30: #{tpu_custom_call.1} parent=19 // pred_check_branch
          %342 = sbr.rel (%p340) target = $region32
        $region31: #{tpu_custom_call.1} parent=19 // pred_region
          %s343 = sand.u32 %s24, 1
          %s344 = scalar_lea.sflag [#allocation7], %s343
          %s345 = sand.u32 %s98, 1
          %s346 = scalar_lea.vmem [#allocation6], %s345
          %348 = vsyncadd %s344, 0
          %s349 = scalar_lea.hbm %s2, %s32
          %s351 = sshll.u32 %s349, 4
          %s352 = int_to_ptr.hbm [resolvable:$true] %s351
          %s353 = sshll.u32 %s346, 4
          %s354 = int_to_ptr.vmem [resolvable:$true] %s353
          %356 = dma.hbm_to_vmem [thread:$0]  %s352, 16, %s354, %s344
        $region32: #{tpu_custom_call.1} parent=19 // pred_fallthru
          _
        // Predicated region
        $region33: #{tpu_custom_call.1} parent=19 // pred_check
          %p357 = pneg %p134
        $region34: #{tpu_custom_call.1} parent=19 // pred_check_branch
          %359 = sbr.rel (%p357) target = $region36
        $region35: #{tpu_custom_call.1} parent=19 // pred_region
          %p360 = scmp.lt.s32.totalorder %s32, 1
          %s361 = scalar_select %p360, %s32, 1
          %s362 = smul.addr %s361, 4
          %s363 = smul.addr %s362, 4
          %s364 = scalar_lea.vmem %s3, %s363
        $region36: #{tpu_custom_call.1} parent=19 // pred_fallthru
          _
        // Predicated region
        $region37: #{tpu_custom_call.1} parent=19 // pred_check
          %p365 = pneg %p160
        $region38: #{tpu_custom_call.1} parent=19 // pred_check_branch
          %367 = sbr.rel (%p365) target = $region40
        $region39: #{tpu_custom_call.1} parent=19 // pred_region
          %p368 = scmp.lt.s32.totalorder %s32, 1
          %s369 = scalar_select %p368, %s32, 1
          %s370 = smul.addr %s369, 4
          %s371 = smul.addr %s370, 4
          %s372 = scalar_lea.vmem %s4, %s371
        $region40: #{tpu_custom_call.1} parent=19 // pred_fallthru
          _
        // Predicated region
        $region41: #{tpu_custom_call.1} parent=19 // pred_check
          %p373 = pneg %p186
        $region42: #{tpu_custom_call.1} parent=19 // pred_check_branch
          %375 = sbr.rel (%p373) target = $region44
        $region43: #{tpu_custom_call.1} parent=19 // pred_region
          %s376 = sand.u32 %s24, 1
          %s377 = scalar_lea.sflag [#allocation7], %s376
          %s378 = sand.u32 %s176, 1
          %s379 = scalar_lea.vmem [#allocation8], %s378
          %381 = vsyncadd %s377, 0
          %s382 = scalar_lea.hbm %s5, %s32
          %s384 = sshll.u32 %s382, 4
          %s385 = int_to_ptr.hbm [resolvable:$true] %s384
          %s386 = sshll.u32 %s379, 4
          %s387 = int_to_ptr.vmem [resolvable:$true] %s386
          %389 = dma.hbm_to_vmem [thread:$0]  %s385, 16, %s387, %s377
        $region44: #{tpu_custom_call.1} parent=19 // pred_fallthru
          _
        // Predicated region
        $region45: #{tpu_custom_call.1} parent=19 // pred_check
          %p390 = pneg %p212
        $region46: #{tpu_custom_call.1} parent=19 // pred_check_branch
          %392 = sbr.rel (%p390) target = $region48
        $region47: #{tpu_custom_call.1} parent=19 // pred_region
          %p393 = scmp.lt.s32.totalorder %s32, 1
          %s394 = scalar_select %p393, %s32, 1
          %s395 = smul.addr %s394, 8
          %s396 = smul.addr %s395, 4
          %s397 = scalar_lea.vmem %s6, %s396
        $region48: #{tpu_custom_call.1} parent=19 // pred_fallthru
          _
        // Predicated region
        $region49: #{tpu_custom_call.1} parent=19 // pred_check
          %p398 = pneg %p238
        $region50: #{tpu_custom_call.1} parent=19 // pred_check_branch
          %400 = sbr.rel (%p398) target = $region52
        $region51: #{tpu_custom_call.1} parent=19 // pred_region
          %p401 = scmp.lt.s32.totalorder %s32, 1
          %s402 = scalar_select %p401, %s32, 1
          %s403 = smul.addr %s402, 8
          %s404 = scalar_lea.vmem %s7, %s403
        $region52: #{tpu_custom_call.1} parent=19 // pred_fallthru
          _
      $region20: #{tpu_custom_call.1} parent=5 // pred_fallthru
        _
      %p405 = scmp.le.s32.totalorder 1, %s24
      %p406 = scmp.lt.s32.totalorder %s24, 5
      %p407 = pnand %p405, %p406
      %p408 = pneg %p407
      // Predicated region
      $region53: #{tpu_custom_call.1} parent=5 // pred_check
        _
      $region54: #{tpu_custom_call.1} parent=5 // pred_check_branch
        %410 = sbr.rel (%p407) target = $region56
      $region55: #{tpu_custom_call.1} parent=5 // pred_region
        %s411 = ssub.s32 %s24, 1
        %s412 = sand.u32 %s49, 1
        %s413 = scalar_lea.sflag [#allocation4], %s412
        %s414 = sand.u32 %s49, 1
        %s415 = smul.addr %s414, 8
        %s416 = scalar_lea.vmem [#allocation3], %s415
        // Predicated region
        $region57: #{tpu_custom_call.1} parent=55 // pred_check
          %p417 = pneg %p62
        $region58: #{tpu_custom_call.1} parent=55 // pred_check_branch
          %419 = sbr.rel (%p417) target = $region60
        $region59: #{tpu_custom_call.1} parent=55 // pred_region
          %421 = dma.done %s413, 128
        $region60: #{tpu_custom_call.1} parent=55 // pred_fallthru
          _
        %s422 = sand.u32 %s29, 1
        %s423 = scalar_lea.sflag [#allocation7], %s422
        %s424 = sand.u32 %s101, 1
        %s425 = scalar_lea.vmem [#allocation6], %s424
        // Predicated region
        $region61: #{tpu_custom_call.1} parent=55 // pred_check
          %p426 = pneg %p114
        $region62: #{tpu_custom_call.1} parent=55 // pred_check_branch
          %428 = sbr.rel (%p426) target = $region64
        $region63: #{tpu_custom_call.1} parent=55 // pred_region
          %430 = dma.done %s423, 16
        $region64: #{tpu_custom_call.1} parent=55 // pred_fallthru
          _
        %s431 = sand.u32 %s29, 1
        %s432 = scalar_lea.sflag [#allocation7], %s431
        %s433 = sand.u32 %s179, 1
        %s434 = scalar_lea.vmem [#allocation8], %s433
        // Predicated region
        $region65: #{tpu_custom_call.1} parent=55 // pred_check
          %p435 = pneg %p192
        $region66: #{tpu_custom_call.1} parent=55 // pred_check_branch
          %437 = sbr.rel (%p435) target = $region68
        $region67: #{tpu_custom_call.1} parent=55 // pred_region
          %439 = dma.done %s432, 16
        $region68: #{tpu_custom_call.1} parent=55 // pred_fallthru
          _
        %s440 = sand.u32 %s49, 1
        %s441 = scalar_lea.sflag [#allocation4], %s440
        %s442 = sand.u32 %s49, 1
        %s443 = smul.addr %s442, 8
        %s444 = scalar_lea.vmem [#allocation3], %s443
        %p445 = pneg %p62
        %p446 = pneg %p59
        %p447 = scmp.lt.s32.totalorder %s34, 1
        %s448 = scalar_select %p447, %s34, 1
        %s449 = smul.addr %s448, 4
        %s450 = smul.addr %s449, 4
        %s451 = scalar_lea.vmem %s1, %s450
        %p452 = pneg %p88
        %p453 = pneg %p85
        %s454 = sand.u32 %s29, 1
        %s455 = scalar_lea.sflag [#allocation7], %s454
        %s456 = sand.u32 %s101, 1
        %s457 = scalar_lea.vmem [#allocation6], %s456
        %p458 = pneg %p114
        %p459 = pneg %p111
        %p460 = scmp.lt.s32.totalorder %s34, 1
        %s461 = scalar_select %p460, %s34, 1
        %s462 = smul.addr %s461, 4
        %s463 = smul.addr %s462, 4
        %s464 = scalar_lea.vmem %s3, %s463
        %p465 = pneg %p140
        %p466 = pneg %p137
        %p467 = scmp.lt.s32.totalorder %s34, 1
        %s468 = scalar_select %p467, %s34, 1
        %s469 = smul.addr %s468, 4
        %s470 = smul.addr %s469, 4
        %s471 = scalar_lea.vmem %s4, %s470
        %p472 = pneg %p166
        %p473 = pneg %p163
        %s474 = sand.u32 %s29, 1
        %s475 = scalar_lea.sflag [#allocation7], %s474
        %s476 = sand.u32 %s179, 1
        %s477 = scalar_lea.vmem [#allocation8], %s476
        %p478 = pneg %p192
        %p479 = pneg %p189
        %p480 = scmp.lt.s32.totalorder %s34, 1
        %s481 = scalar_select %p480, %s34, 1
        %s482 = smul.addr %s481, 8
        %s483 = smul.addr %s482, 4
        %s484 = scalar_lea.vmem %s6, %s483
        %p485 = pneg %p218
        %p486 = pneg %p215
        %p487 = scmp.lt.s32.totalorder %s34, 1
        %s488 = scalar_select %p487, %s34, 1
        %s489 = smul.addr %s488, 8
        %s490 = scalar_lea.vmem %s7, %s489
        %p491 = pneg %p244
        %p492 = pneg %p241
        %p493 = pneg %p265
        %p494 = pneg %p262
        %p495 = pneg %p291
        %p496 = pneg %p288
        %s497 = sand.u32 %s278, 1
        %s498 = scalar_lea.sflag [#allocation5], %s497
        %s499 = sand.u32 %s278, 1
        %s500 = smul.addr %s499, 8
        %s501 = scalar_lea.vmem [#allocation9], %s500
        %p502 = scmp.lt.s32.totalorder %s34, 1
        %s503 = scalar_select %p502, %s34, 1
        %s504 = smul.addr %s503, 4
        %s505 = smul.addr %s504, 4
        %s506 = scalar_lea.vmem %s1, %s505
        %p507 = scmp.lt.s32.totalorder %s34, 1
        %s508 = scalar_select %p507, %s34, 1
        %s509 = smul.addr %s508, 4
        %s510 = smul.addr %s509, 4
        %s511 = scalar_lea.vmem %s3, %s510
        %p512 = scmp.lt.s32.totalorder %s34, 1
        %s513 = scalar_select %p512, %s34, 1
        %s514 = smul.addr %s513, 4
        %s515 = smul.addr %s514, 4
        %s516 = scalar_lea.vmem %s4, %s515
        %p517 = scmp.lt.s32.totalorder %s34, 1
        %s518 = scalar_select %p517, %s34, 1
        %s519 = smul.addr %s518, 8
        %s520 = smul.addr %s519, 4
        %s521 = scalar_lea.vmem %s6, %s520
        %p522 = scmp.lt.s32.totalorder %s34, 1
        %s523 = scalar_select %p522, %s34, 1
        %s524 = smul.addr %s523, 8
        %s525 = scalar_lea.vmem %s7, %s524
        %p527 = scmp.eq.s32.totalorder %s34, 0
        // Predicated region
        $region69: #{tpu_custom_call.1} parent=55 // pred_check
          %p528 = pneg %p527
        $region70: #{tpu_custom_call.1} parent=55 // pred_check_branch
          %530 = sbr.rel (%p528) target = $region72
        $region71: #{tpu_custom_call.1} parent=55 // pred_region
          %v531 = vld [vmem:[%s416] sm:$0xff]
          %vm532 = vcmask 261120
          %533 = vst.msk [vmem:[#allocation2] sm:$0xff] %vm532, %v531
        $region72: #{tpu_custom_call.1} parent=55 // pred_fallthru
          _
        %v534 = vld [vmem:[#allocation2] sm:$0xff]
        %v535 = vld [vmem:[%s525] sm:$0x1]
        %v536 = vld [vmem:[%s525 + $0x1] sm:$0x1]
        %v537 = vld [vmem:[%s525 + $0x2] sm:$0x1]
        %v538 = vld [vmem:[%s525 + $0x3] sm:$0x1]
        %v539 = vld [vmem:[%s525 + $0x4] sm:$0x1]
        %v540 = vld [vmem:[%s525 + $0x5] sm:$0x1]
        %v541 = vpack.c.bf16 %v534, %v534
        %v542 = vld [vmem:[%s506] sm:$0xf]
        %v543 = vld [vmem:[%s506 + $0x4] sm:$0xf]
        %v544 = vld [vmem:[%s506 + $0x8] sm:$0xf]
        %v545 = vld [vmem:[%s506 + $0xc] sm:$0xf]
        %v546 = vld [vmem:[%s425] sm:$0x1]
        %v548 = vperm.slane %v546, 0
        %v554 = vunpack.c.l.b16 %v542
        %v555 = vunpack.c.l.b16 %v543
        %v556 = vunpack.c.l.b16 %v544
        %v557 = vunpack.c.l.b16 %v545
        %v558 = vpack.c.b16 %v555, %v554
        %v559 = vpack.c.b16 %v557, %v556
        %vm562 = vcmask 261120
        %v564 = vsel %vm562, %v541, 0
        %566 = vmatpush.bf16.msra.mxu0 0
        %567 = vmatpush.bf16.msra.mxu0 0
        %568 = vmatpush.bf16.msra.mxu0 0
        %569 = vmatpush.bf16.msra.mxu0 0
        %570 = vmatpush.bf16.msra.mxu0 0
        %571 = vmatpush.bf16.msra.mxu0 0
        %572 = vmatpush.bf16.msra.mxu0 %v559
        %573 = vmatpush.bf16.msra.mxu0 %v558
        %574 = vmatmul.bf16.gmra.mxu0 %v564
        %v575 = vpop.f32.mrf.mxu0
        %v576 = vadd.f32 %v548, %v575
        %v577 = vpop.f32.mrf.mxu0
        %578 = vdwg.mxu0
        %v579 = vpack.c.bf16 %v576, %v576
        %581 = vrot.lane.b32.xlu0 %v579, 120
        %v582 = vpop.permute.xlu0 %581
        %583 = vrot.lane.b32.xlu0 %v579, 112
        %v584 = vpop.permute.xlu0 %583
        %585 = vrot.lane.b32.xlu0 %v579, 104
        %v586 = vpop.permute.xlu0 %585
        %v587 = vunpack.c.l.b16 %v579
        %v588 = vpack.c.b16 %v587, %v587
        %589 = vrot.lane.b32.xlu0 %v588, 96
        %v590 = vpop.permute.xlu0 %589
        %vm591 = vcmask 64512
        %v593 = vsel %vm591, %v579, 0
        %v596 = vsel %vm591, %v590, 0
        %598 = vmatpush.bf16.xpose.msra.mxu0 0
        %599 = vmatpush.bf16.xpose.msra.mxu0 0
        %600 = vmatpush.bf16.xpose.msra.mxu0 0
        %601 = vmatpush.bf16.xpose.msra.mxu0 0
        %602 = vmatpush.bf16.xpose.msra.mxu0 0
        %603 = vmatpush.bf16.xpose.msra.mxu0 0
        %604 = vmatpush.bf16.xpose.msra.mxu0 0
        %605 = vmatpush.bf16.xpose.msra.mxu0 %v596
        %606 = vmatmul.bf16.gmra.mxu0 %v593
        %v607 = vpop.f32.mrf.mxu0
        %v608 = vadd.f32 0.0, %v607
        %v609 = vpop.f32.mrf.mxu0
        %610 = vdwg.mxu0
        %v611 = vunpack.c.l.b16 %v582
        %v612 = vpack.c.b16 %v611, %v611
        %613 = vrot.lane.b32.xlu0 %v612, 96
        %v614 = vpop.permute.xlu0 %613
        %v616 = vsel %vm591, %v582, 0
        %v619 = vsel %vm591, %v614, 0
        %621 = vmatpush.bf16.xpose.msra.mxu0 0
        %622 = vmatpush.bf16.xpose.msra.mxu0 0
        %623 = vmatpush.bf16.xpose.msra.mxu0 0
        %624 = vmatpush.bf16.xpose.msra.mxu0 0
        %625 = vmatpush.bf16.xpose.msra.mxu0 0
        %626 = vmatpush.bf16.xpose.msra.mxu0 0
        %627 = vmatpush.bf16.xpose.msra.mxu0 0
        %628 = vmatpush.bf16.xpose.msra.mxu0 %v619
        %629 = vmatmul.bf16.gmra.mxu0 %v616
        %v630 = vpop.f32.mrf.mxu0
        %v631 = vadd.f32 0.0, %v630
        %v632 = vpop.f32.mrf.mxu0
        %633 = vdwg.mxu0
        %v634 = vunpack.c.l.b16 %v584
        %v635 = vpack.c.b16 %v634, %v634
        %636 = vrot.lane.b32.xlu0 %v635, 96
        %v637 = vpop.permute.xlu0 %636
        %v639 = vsel %vm591, %v584, 0
        %v642 = vsel %vm591, %v637, 0
        %644 = vmatpush.bf16.xpose.msra.mxu0 0
        %645 = vmatpush.bf16.xpose.msra.mxu0 0
        %646 = vmatpush.bf16.xpose.msra.mxu0 0
        %647 = vmatpush.bf16.xpose.msra.mxu0 0
        %648 = vmatpush.bf16.xpose.msra.mxu0 0
        %649 = vmatpush.bf16.xpose.msra.mxu0 0
        %650 = vmatpush.bf16.xpose.msra.mxu0 0
        %651 = vmatpush.bf16.xpose.msra.mxu0 %v642
        %652 = vmatmul.bf16.gmra.mxu0 %v639
        %v653 = vpop.f32.mrf.mxu0
        %v654 = vadd.f32 0.0, %v653
        %v655 = vpop.f32.mrf.mxu0
        %656 = vdwg.mxu0
        %v657 = vunpack.c.l.b16 %v586
        %v658 = vpack.c.b16 %v657, %v657
        %659 = vrot.lane.b32.xlu0 %v658, 96
        %v660 = vpop.permute.xlu0 %659
        %v662 = vsel %vm591, %v586, 0
        %v665 = vsel %vm591, %v660, 0
        %667 = vmatpush.bf16.xpose.msra.mxu0 0
        %668 = vmatpush.bf16.xpose.msra.mxu0 0
        %669 = vmatpush.bf16.xpose.msra.mxu0 0
        %670 = vmatpush.bf16.xpose.msra.mxu0 0
        %671 = vmatpush.bf16.xpose.msra.mxu0 0
        %672 = vmatpush.bf16.xpose.msra.mxu0 0
        %673 = vmatpush.bf16.xpose.msra.mxu0 0
        %674 = vmatpush.bf16.xpose.msra.mxu0 %v665
        %675 = vmatmul.bf16.gmra.mxu0 %v662
        %v676 = vpop.f32.mrf.mxu0
        %v677 = vadd.f32 0.0, %v676
        %v678 = vpop.f32.mrf.mxu0
        %679 = vdwg.mxu0
        %v680 = vmul.f32 %v608, 0.35355338
        %v681 = vmul.f32 %v631, 0.35355338
        %v682 = vmul.f32 %v654, 0.35355338
        %v683 = vmul.f32 %v677, 0.35355338
        %v684 = vsel %vm591, %v680, -inf
        %685 = vmax.xlane.f32.xlu0 %v684
        %v686 = vpop.xlane.xlu0 %685
        %v687 = vsel %vm591, %v681, -inf
        %688 = vmax.xlane.f32.xlu0 %v687
        %v689 = vpop.xlane.xlu0 %688
        %v690 = vsel %vm591, %v682, -inf
        %691 = vmax.xlane.f32.xlu0 %v690
        %v692 = vpop.xlane.xlu0 %691
        %v693 = vsel %vm591, %v683, -inf
        %694 = vmax.xlane.f32.xlu0 %v693
        %v695 = vpop.xlane.xlu0 %694
        %v696 = vsub.f32 %v680, %v686
        %v697 = vsub.f32 %v681, %v689
        %v698 = vsub.f32 %v682, %v692
        %v699 = vsub.f32 %v683, %v695
        %v700 = vmul.f32 %v696, 1.442695
        %v701 = vpow.pop %v700
        %v702 = vmul.f32 %v697, 1.442695
        %v703 = vpow.pop %v702
        %v704 = vmul.f32 %v698, 1.442695
        %v705 = vpow.pop %v704
        %v706 = vmul.f32 %v699, 1.442695
        %v707 = vpow.pop %v706
        %v708 = vsel %vm591, %v701, 0.0
        %709 = vadd.xlane.f32.xlu0 %v708
        %v710 = vpop.xlane.xlu0 %709
        %v711 = vsel %vm591, %v703, 0.0
        %712 = vadd.xlane.f32.xlu0 %v711
        %v713 = vpop.xlane.xlu0 %712
        %v714 = vsel %vm591, %v705, 0.0
        %715 = vadd.xlane.f32.xlu0 %v714
        %v716 = vpop.xlane.xlu0 %715
        %v717 = vsel %vm591, %v707, 0.0
        %718 = vadd.xlane.f32.xlu0 %v717
        %v719 = vpop.xlane.xlu0 %718
        %v720 = vrcp.pop %v710
        %v721 = vmul.f32 %v710, %v720
        %v722 = vsub.f32 1.0, %v721
        %v723 = vmul.f32 %v720, %v722
        %v724 = vadd.f32 %v720, %v723
        %vm725 = vweird.f32 %v710
        %vm726 = vweird.f32 %v720
        %vm727 = vmor %vm725, %vm726
        %v728 = vsel %vm727, %v720, %v724
        %v729 = vand.u32 2147483647, %v710
        %vm730 = vcmp.eq.f32.partialorder %v729, 8.507059e+37
        %v731 = vand.u32 %v710, 2147483648
        %v732 = vor.u32 1.1754944e-38, %v731
        %v733 = vsel %vm730, %v732, %v728
        %v734 = vmul.f32 %v701, %v733
        %v735 = vrcp.pop %v713
        %v736 = vmul.f32 %v713, %v735
        %v737 = vsub.f32 1.0, %v736
        %v738 = vmul.f32 %v735, %v737
        %v739 = vadd.f32 %v735, %v738
        %vm740 = vweird.f32 %v713
        %vm741 = vweird.f32 %v735
        %vm742 = vmor %vm740, %vm741
        %v743 = vsel %vm742, %v735, %v739
        %v744 = vand.u32 2147483647, %v713
        %vm745 = vcmp.eq.f32.partialorder %v744, 8.507059e+37
        %v746 = vand.u32 %v713, 2147483648
        %v747 = vor.u32 1.1754944e-38, %v746
        %v748 = vsel %vm745, %v747, %v743
        %v749 = vmul.f32 %v703, %v748
        %v750 = vrcp.pop %v716
        %v751 = vmul.f32 %v716, %v750
        %v752 = vsub.f32 1.0, %v751
        %v753 = vmul.f32 %v750, %v752
        %v754 = vadd.f32 %v750, %v753
        %vm755 = vweird.f32 %v716
        %vm756 = vweird.f32 %v750
        %vm757 = vmor %vm755, %vm756
        %v758 = vsel %vm757, %v750, %v754
        %v759 = vand.u32 2147483647, %v716
        %vm760 = vcmp.eq.f32.partialorder %v759, 8.507059e+37
        %v761 = vand.u32 %v716, 2147483648
        %v762 = vor.u32 1.1754944e-38, %v761
        %v763 = vsel %vm760, %v762, %v758
        %v764 = vmul.f32 %v705, %v763
        %v765 = vrcp.pop %v719
        %v766 = vmul.f32 %v719, %v765
        %v767 = vsub.f32 1.0, %v766
        %v768 = vmul.f32 %v765, %v767
        %v769 = vadd.f32 %v765, %v768
        %vm770 = vweird.f32 %v719
        %vm771 = vweird.f32 %v765
        %vm772 = vmor %vm770, %vm771
        %v773 = vsel %vm772, %v765, %v769
        %v774 = vand.u32 2147483647, %v719
        %vm775 = vcmp.eq.f32.partialorder %v774, 8.507059e+37
        %v776 = vand.u32 %v719, 2147483648
        %v777 = vor.u32 1.1754944e-38, %v776
        %v778 = vsel %vm775, %v777, %v773
        %v779 = vmul.f32 %v707, %v778
        %v780 = vpack.c.bf16 %v734, %v734
        %v781 = vpack.c.bf16 %v749, %v749
        %v782 = vpack.c.bf16 %v764, %v764
        %v783 = vpack.c.bf16 %v779, %v779
        %784 = vrot.lane.b32.xlu0 %v588, 64
        %v785 = vpop.permute.xlu0 %784
        %v787 = vsel %vm591, %v780, 0
        %vm789 = vcmask 1043456
        %v791 = vsel %vm789, %v785, 0
        %793 = vmatpush.bf16.msra.mxu0 0
        %794 = vmatpush.bf16.msra.mxu0 0
        %795 = vmatpush.bf16.msra.mxu0 0
        %796 = vmatpush.bf16.msra.mxu0 0
        %797 = vmatpush.bf16.msra.mxu0 0
        %798 = vmatpush.bf16.msra.mxu0 0
        %799 = vmatpush.bf16.msra.mxu0 0
        %800 = vmatpush.bf16.msra.mxu0 %v791
        %801 = vmatmul.bf16.gmra.mxu0 %v787
        %v802 = vpop.f32.mrf.mxu0
        %v803 = vadd.f32 0.0, %v802
        %v804 = vpop.f32.mrf.mxu0
        %805 = vdwg.mxu0
        %806 = vrot.lane.b32.xlu0 %v612, 64
        %v807 = vpop.permute.xlu0 %806
        %v809 = vsel %vm591, %v781, 0
        %v812 = vsel %vm789, %v807, 0
        %814 = vmatpush.bf16.msra.mxu0 0
        %815 = vmatpush.bf16.msra.mxu0 0
        %816 = vmatpush.bf16.msra.mxu0 0
        %817 = vmatpush.bf16.msra.mxu0 0
        %818 = vmatpush.bf16.msra.mxu0 0
        %819 = vmatpush.bf16.msra.mxu0 0
        %820 = vmatpush.bf16.msra.mxu0 0
        %821 = vmatpush.bf16.msra.mxu0 %v812
        %822 = vmatmul.bf16.gmra.mxu0 %v809
        %v823 = vpop.f32.mrf.mxu0
        %v824 = vadd.f32 0.0, %v823
        %v825 = vpop.f32.mrf.mxu0
        %826 = vdwg.mxu0
        %827 = vrot.lane.b32.xlu0 %v635, 64
        %v828 = vpop.permute.xlu0 %827
        %v830 = vsel %vm591, %v782, 0
        %v833 = vsel %vm789, %v828, 0
        %835 = vmatpush.bf16.msra.mxu0 0
        %836 = vmatpush.bf16.msra.mxu0 0
        %837 = vmatpush.bf16.msra.mxu0 0
        %838 = vmatpush.bf16.msra.mxu0 0
        %839 = vmatpush.bf16.msra.mxu0 0
        %840 = vmatpush.bf16.msra.mxu0 0
        %841 = vmatpush.bf16.msra.mxu0 0
        %842 = vmatpush.bf16.msra.mxu0 %v833
        %843 = vmatmul.bf16.gmra.mxu0 %v830
        %v844 = vpop.f32.mrf.mxu0
        %v845 = vadd.f32 0.0, %v844
        %v846 = vpop.f32.mrf.mxu0
        %847 = vdwg.mxu0
        %848 = vrot.lane.b32.xlu0 %v658, 64
        %v849 = vpop.permute.xlu0 %848
        %v851 = vsel %vm591, %v783, 0
        %v854 = vsel %vm789, %v849, 0
        %856 = vmatpush.bf16.msra.mxu0 0
        %857 = vmatpush.bf16.msra.mxu0 0
        %858 = vmatpush.bf16.msra.mxu0 0
        %859 = vmatpush.bf16.msra.mxu0 0
        %860 = vmatpush.bf16.msra.mxu0 0
        %861 = vmatpush.bf16.msra.mxu0 0
        %862 = vmatpush.bf16.msra.mxu0 0
        %863 = vmatpush.bf16.msra.mxu0 %v854
        %864 = vmatmul.bf16.gmra.mxu0 %v851
        %v865 = vpop.f32.mrf.mxu0
        %v866 = vadd.f32 0.0, %v865
        %v867 = vpop.f32.mrf.mxu0
        %868 = vdwg.mxu0
        %870 = vrot.lane.b32.xlu0 %v824, 8
        %v871 = vpop.permute.xlu0 %870
        %874 = vrot.lane.b32.xlu0 %v845, 16
        %v875 = vpop.permute.xlu0 %874
        %878 = vrot.lane.b32.xlu0 %v866, 24
        %v879 = vpop.permute.xlu0 %878
        %v881 = vsel %vm591, %v803, %v871
        %vm882 = vcmask 130048
        %v883 = vsel %vm882, %v881, %v875
        %vm884 = vcmask 195584
        %v885 = vsel %vm884, %v883, %v879
        %v886 = vpack.c.bf16 %v885, %v885
        %v887 = vld [vmem:[%s511] sm:$0xf]
        %v888 = vld [vmem:[%s511 + $0x4] sm:$0xf]
        %v889 = vld [vmem:[%s511 + $0x8] sm:$0xf]
        %v890 = vld [vmem:[%s511 + $0xc] sm:$0xf]
        %v891 = vperm.slane %v535, 0
        %v896 = vunpack.c.l.b16 %v887
        %v897 = vunpack.c.l.b16 %v888
        %v898 = vunpack.c.l.b16 %v889
        %v899 = vunpack.c.l.b16 %v890
        %v900 = vpack.c.b16 %v897, %v896
        %v901 = vpack.c.b16 %v899, %v898
        %v905 = vsel %vm562, %v886, 0
        %907 = vmatpush.bf16.msra.mxu0 0
        %908 = vmatpush.bf16.msra.mxu0 0
        %909 = vmatpush.bf16.msra.mxu0 0
        %910 = vmatpush.bf16.msra.mxu0 0
        %911 = vmatpush.bf16.msra.mxu0 0
        %912 = vmatpush.bf16.msra.mxu0 0
        %913 = vmatpush.bf16.msra.mxu0 %v901
        %914 = vmatpush.bf16.msra.mxu0 %v900
        %915 = vmatmul.bf16.gmra.mxu0 %v905
        %v916 = vpop.f32.mrf.mxu0
        %v917 = vadd.f32 %v891, %v916
        %v918 = vpop.f32.mrf.mxu0
        %919 = vdwg.mxu0
        %v920 = vadd.f32 %v534, %v917
        %v921 = vsel %vm562, %v920, 0.0
        %922 = vadd.xlane.f32.xlu0 %v921
        %v923 = vpop.xlane.xlu0 %922
        %v924 = vrcp.pop 32.0
        %v925 = vmul.f32 32.0, %v924
        %v926 = vsub.f32 1.0, %v925
        %v927 = vmul.f32 %v924, %v926
        %v928 = vadd.f32 %v924, %v927
        %vm929 = vweird.f32 %v924
        %v930 = vsel %vm929, %v924, %v928
        %v931 = vmul.f32 %v923, %v930
        %v932 = vsub.f32 %v920, %v931
        %v933 = vmul.f32 %v932, %v932
        %v934 = vsel %vm562, %v933, 0.0
        %935 = vadd.xlane.f32.xlu0 %v934
        %v936 = vpop.xlane.xlu0 %935
        %v937 = vmul.f32 %v936, %v930
        %v938 = vadd.f32 %v937, 1e-05
        %v939 = vrsqrt.pop %v938
        %v940 = vmul.f32 %v939, %v938
        %v941 = vmul.f32 %v940, %v939
        %v942 = vmul.f32 0.5, %v941
        %v943 = vsub.f32 1.5, %v942
        %v944 = vmul.f32 %v939, %v943
        %vm945 = vweird.f32 %v938
        %vm946 = vweird.f32 %v939
        %vm947 = vmor %vm945, %vm946
        %v948 = vsel %vm947, %v939, %v944
        %v949 = vmul.f32 %v932, %v948
        %v950 = vperm.slane %v537, 0
        %v951 = vmul.f32 %v949, %v950
        %v952 = vperm.slane %v538, 0
        %v953 = vadd.f32 %v951, %v952
        %v954 = vpack.c.bf16 %v953, %v953
        %v955 = vld [vmem:[%s516] sm:$0xf]
        %v956 = vld [vmem:[%s516 + $0x4] sm:$0xf]
        %v957 = vld [vmem:[%s516 + $0x8] sm:$0xf]
        %v958 = vld [vmem:[%s516 + $0xc] sm:$0xf]
        %v959 = vld [vmem:[%s434] sm:$0x1]
        %v961 = vperm.slane %v959, 0
        %v967 = vunpack.c.l.b16 %v955
        %v968 = vunpack.c.l.b16 %v956
        %v969 = vunpack.c.l.b16 %v957
        %v970 = vunpack.c.l.b16 %v958
        %v971 = vpack.c.b16 %v968, %v967
        %v972 = vpack.c.b16 %v970, %v969
        %v976 = vsel %vm562, %v954, 0
        %978 = vmatpush.bf16.msra.mxu0 0
        %979 = vmatpush.bf16.msra.mxu0 0
        %980 = vmatpush.bf16.msra.mxu0 0
        %981 = vmatpush.bf16.msra.mxu0 0
        %982 = vmatpush.bf16.msra.mxu0 0
        %983 = vmatpush.bf16.msra.mxu0 0
        %984 = vmatpush.bf16.msra.mxu0 %v972
        %985 = vmatpush.bf16.msra.mxu0 %v971
        %986 = vmatmul.bf16.gmra.mxu0 %v976
        %v987 = vpop.f32.mrf.mxu0
        %v988 = vadd.f32 %v961, %v987
        %v989 = vpop.f32.mrf.mxu0
        %990 = vdwg.mxu0
        %v991 = vmax.f32 %v988, 0.0
        %v992 = vpack.c.bf16 %v991, %v991
        %v993 = vld [vmem:[%s521] sm:$0xf]
        %v994 = vld [vmem:[%s521 + $0x4] sm:$0xf]
        %v995 = vld [vmem:[%s521 + $0x8] sm:$0xf]
        %v996 = vld [vmem:[%s521 + $0xc] sm:$0xf]
        %v997 = vld [vmem:[%s521 + $0x10] sm:$0xf]
        %v998 = vld [vmem:[%s521 + $0x14] sm:$0xf]
        %v999 = vld [vmem:[%s521 + $0x18] sm:$0xf]
        %v1000 = vld [vmem:[%s521 + $0x1c] sm:$0xf]
        %v1001 = vperm.slane %v536, 0
        %v1010 = vunpack.c.l.b16 %v993
        %v1011 = vunpack.c.l.b16 %v994
        %v1012 = vunpack.c.l.b16 %v995
        %v1013 = vunpack.c.l.b16 %v996
        %v1014 = vunpack.c.l.b16 %v997
        %v1015 = vunpack.c.l.b16 %v998
        %v1016 = vunpack.c.l.b16 %v999
        %v1017 = vunpack.c.l.b16 %v1000
        %v1018 = vpack.c.b16 %v1011, %v1010
        %v1019 = vpack.c.b16 %v1013, %v1012
        %v1020 = vpack.c.b16 %v1015, %v1014
        %v1021 = vpack.c.b16 %v1017, %v1016
        %vm1026 = vcmask 523264
        %v1028 = vsel %vm1026, %v992, 0
        %1030 = vmatpush.bf16.msra.mxu0 0
        %1031 = vmatpush.bf16.msra.mxu0 0
        %1032 = vmatpush.bf16.msra.mxu0 0
        %1033 = vmatpush.bf16.msra.mxu0 0
        %1034 = vmatpush.bf16.msra.mxu0 %v1021
        %1035 = vmatpush.bf16.msra.mxu0 %v1020
        %1036 = vmatpush.bf16.msra.mxu0 %v1019
        %1037 = vmatpush.bf16.msra.mxu0 %v1018
        %1038 = vmatmul.bf16.gmra.mxu0 %v1028
        %v1039 = vpop.f32.mrf.mxu0
        %v1040 = vadd.f32 %v1001, %v1039
        %v1041 = vpop.f32.mrf.mxu0
        %1042 = vdwg.mxu0
        %v1043 = vadd.f32 %v953, %v1040
        %v1044 = vsel %vm562, %v1043, 0.0
        %1045 = vadd.xlane.f32.xlu0 %v1044
        %v1046 = vpop.xlane.xlu0 %1045
        %v1047 = vmul.f32 %v1046, %v930
        %v1048 = vsub.f32 %v1043, %v1047
        %v1049 = vmul.f32 %v1048, %v1048
        %v1050 = vsel %vm562, %v1049, 0.0
        %1051 = vadd.xlane.f32.xlu0 %v1050
        %v1052 = vpop.xlane.xlu0 %1051
        %v1053 = vmul.f32 %v1052, %v930
        %v1054 = vadd.f32 %v1053, 1e-05
        %v1055 = vrsqrt.pop %v1054
        %v1056 = vmul.f32 %v1055, %v1054
        %v1057 = vmul.f32 %v1056, %v1055
        %v1058 = vmul.f32 0.5, %v1057
        %v1059 = vsub.f32 1.5, %v1058
        %v1060 = vmul.f32 %v1055, %v1059
        %vm1061 = vweird.f32 %v1054
        %vm1062 = vweird.f32 %v1055
        %vm1063 = vmor %vm1061, %vm1062
        %v1064 = vsel %vm1063, %v1055, %v1060
        %v1065 = vmul.f32 %v1048, %v1064
        %v1066 = vperm.slane %v539, 0
        %v1067 = vmul.f32 %v1065, %v1066
        %v1068 = vperm.slane %v540, 0
        %v1069 = vadd.f32 %v1067, %v1068
        %1070 = vst.msk [vmem:[#allocation2] sm:$0xff] %vm562, %v1069
        %p1071 = scmp.eq.s32.totalorder %s34, 1
        // Predicated region
        $region73: #{tpu_custom_call.1} parent=55 // pred_check
          %p1072 = pneg %p1071
        $region74: #{tpu_custom_call.1} parent=55 // pred_check_branch
          %1074 = sbr.rel (%p1072) target = $region76
        $region75: #{tpu_custom_call.1} parent=55 // pred_region
          %v1075 = vld [vmem:[%s8] sm:$0x1]
          %v1076 = vld [vmem:[%s8 + $0x1] sm:$0x1]
          %v1077 = vsel %vm562, %v1069, 0.0
          %1078 = vadd.xlane.f32.xlu0 %v1077
          %v1079 = vpop.xlane.xlu0 %1078
          %v1080 = vmul.f32 %v1079, %v930
          %v1081 = vsub.f32 %v1069, %v1080
          %v1082 = vmul.f32 %v1081, %v1081
          %v1083 = vsel %vm562, %v1082, 0.0
          %1084 = vadd.xlane.f32.xlu0 %v1083
          %v1085 = vpop.xlane.xlu0 %1084
          %v1086 = vmul.f32 %v1085, %v930
          %v1087 = vadd.f32 %v1086, 1e-05
          %v1088 = vrsqrt.pop %v1087
          %v1089 = vmul.f32 %v1088, %v1087
          %v1090 = vmul.f32 %v1089, %v1088
          %v1091 = vmul.f32 0.5, %v1090
          %v1092 = vsub.f32 1.5, %v1091
          %v1093 = vmul.f32 %v1088, %v1092
          %vm1094 = vweird.f32 %v1087
          %vm1095 = vweird.f32 %v1088
          %vm1096 = vmor %vm1094, %vm1095
          %v1097 = vsel %vm1096, %v1088, %v1093
          %v1098 = vmul.f32 %v1081, %v1097
          %v1099 = vperm.slane %v1075, 0
          %v1100 = vmul.f32 %v1098, %v1099
          %v1101 = vperm.slane %v1076, 0
          %v1102 = vadd.f32 %v1100, %v1101
          %1103 = vst.msk [vmem:[%s501] sm:$0xff] %vm562, %v1102
        $region76: #{tpu_custom_call.1} parent=55 // pred_fallthru
          _
        %s1104 = sand.u32 %s278, 1
        %s1105 = scalar_lea.sflag [#allocation5], %s1104
        %s1106 = sand.u32 %s278, 1
        %s1107 = smul.addr %s1106, 8
        %s1108 = scalar_lea.vmem [#allocation9], %s1107
        // Predicated region
        $region77: #{tpu_custom_call.1} parent=55 // pred_check
          %p1109 = pneg %p288
        $region78: #{tpu_custom_call.1} parent=55 // pred_check_branch
          %1111 = sbr.rel (%p1109) target = $region80
        $region79: #{tpu_custom_call.1} parent=55 // pred_region
          %1113 = vsyncadd %s1105, 0
          %s1114 = smul.addr %s33, 8
          %s1115 = scalar_lea.hbm %s9, %s1114
          %s1117 = sshll.u32 %s1108, 4
          %s1118 = int_to_ptr.vmem [resolvable:$true] %s1117
          %s1119 = sshll.u32 %s1115, 4
          %s1120 = int_to_ptr.hbm [resolvable:$true] %s1119
          %1122 = dma.vmem_to_hbm [thread:$0]  %s1118, 128, %s1120, %s1105
        $region80: #{tpu_custom_call.1} parent=55 // pred_fallthru
          _
      $region56: #{tpu_custom_call.1} parent=5 // pred_fallthru
        _
      %p1123 = scmp.le.s32.totalorder 2, %s24
      // Predicated region
      $region81: #{tpu_custom_call.1} parent=5 // pred_check
        %p1124 = pneg %p1123
      $region82: #{tpu_custom_call.1} parent=5 // pred_check_branch
        %1126 = sbr.rel (%p1124) target = $region84
      $region83: #{tpu_custom_call.1} parent=5 // pred_region
        %s1127 = ssub.s32 %s24, 2
        // Predicated region
        $region85: #{tpu_custom_call.1} parent=83 // pred_check
          %p1128 = pneg %p294
        $region86: #{tpu_custom_call.1} parent=83 // pred_check_branch
          %1130 = sbr.rel (%p1128) target = $region88
        $region87: #{tpu_custom_call.1} parent=83 // pred_region
          %s1131 = sand.u32 %s279, 1
          %s1132 = scalar_lea.sflag [#allocation5], %s1131
          %s1133 = sand.u32 %s279, 1
          %s1134 = smul.addr %s1133, 8
          %s1135 = scalar_lea.vmem [#allocation9], %s1134
          %1137 = dma.done %s1132, 128
        $region88: #{tpu_custom_call.1} parent=83 // pred_fallthru
          _
      $region84: #{tpu_custom_call.1} parent=5 // pred_fallthru
        _
    $region6: #{tpu_custom_call.1} parent=1 // loop_footer
      %s28 = sadd.s32 1, %s24
    $region7: #{tpu_custom_call.1} parent=1 // loop_footer_branch
      %23 = sbr.rel target = $region3
    $region8: #{tpu_custom_call.1} parent=1 // loop_exit
      _
    %1138 = vsyncpa [#allocation4], 1
    %s1139 = scalar_lea.sflag [#allocation4], 1
    %1140 = vsyncpa %s1139, 1
    %1141 = vsyncpa [#allocation7], 1
    %s1142 = scalar_lea.sflag [#allocation7], 1
    %1143 = vsyncpa %s1142, 1
    %1144 = vsyncpa [#allocation5], 1
    %s1145 = scalar_lea.sflag [#allocation5], 1
    %1146 = vsyncpa %s1145, 1

</llo_original>
